<compile_context>
chip_gen: v7x
topology: tpu7x:2x2x1
jax: 0.10.0
libtpu: 0.0.40
codegen_flags: <defaults>
</compile_context>

<pallas_src>
import jax
import jax.numpy as jnp
from jax.experimental import pallas as pl
from jax.experimental.pallas import tpu as pltpu

STATE_DIM = 4
HIDDEN_DIM = 64
ACTION_DIM = 2  # kernel tail exploits ACTION_DIM == 2 (softmax == sigmoid of diff)

_BLOCK_CAP = 8192  # keeps the (64, block_b) f32 intermediate ~2 MiB


def _round_up(n, m):
    return ((n + m - 1) // m) * m


def _choose_block_b(B):
    """Lane-dense batch tile: multiple of 128, adapted to the rollout size."""
    b_up = _round_up(max(B, 1), 128)
    if b_up <= 512:
        return b_up                                   # single grid step
    # >= 2 grid steps (v7x megacore), capped for VMEM / vreg pressure.
    return min(_round_up((b_up + 1) // 2, 128), _BLOCK_CAP)


def policy_kernel(xt_ref, w1_ref, w2_ref, out_ref):
    # xt_ref : (STATE_DIM, block_b)          -- batch along the lane axis
    # w1_ref : (HIDDEN_DIM, STATE_DIM + 1)   -- [W1^T | b1], VMEM-resident
    # w2_ref : (ACTION_DIM, HIDDEN_DIM + 1)  -- [W2^T | b2], VMEM-resident
    # out_ref: (ACTION_DIM, block_b)         -- lane-dense probability slab
    hi = jax.lax.Precision.HIGHEST
    xt = xt_ref[...]
    w1 = w1_ref[...]
    w2 = w2_ref[...]

    # ---- fc1 on the MXU: (64,4) @ (4,Bb) -> (64,Bb); bias + ReLU on VPU -----
    h = jnp.dot(w1[:, :STATE_DIM], xt,
                preferred_element_type=jnp.float32, precision=hi)
    h = jnp.maximum(h + w1[:, STATE_DIM:STATE_DIM + 1], 0.0)

    # ---- fc2 on the MXU: (2,64) @ (64,Bb) -> (2,Bb) --------------------------
    logits = jnp.dot(w2[:, :HIDDEN_DIM], h,
                     preferred_element_type=jnp.float32, precision=hi)
    logits = logits + w2[:, HIDDEN_DIM:HIDDEN_DIM + 1]

    # ---- softmax over 2 actions == sigmoid(l0 - l1) --------------------------
    z = jnp.exp(logits[1:2, :] - logits[0:1, :])      # EUP exp
    d = 1.0 + z
    r = pl.reciprocal(d, approx=True)                 # EUP reciprocal
    r = r * (2.0 - d * r)                             # one Newton step -> f32 accurate
    out_ref[0:1, :] = r                               # p(action 0)
    out_ref[1:2, :] = 1.0 - r                         # p(action 1)


def prepack_params(w1, b1, w2, b2):
    """One-time weight packing (hoist out of the per-rollout-step hot path)."""
    w1p = jnp.concatenate(
        [w1.T.astype(jnp.float32), b1.reshape(HIDDEN_DIM, 1).astype(jnp.float32)],
        axis=1)                                                    # (64, 5)
    w2p = jnp.concatenate(
        [w2.T.astype(jnp.float32), b2.reshape(ACTION_DIM, 1).astype(jnp.float32)],
        axis=1)                                                    # (2, 65)
    return w1p, w2p


def policy_forward(x, w1p, w2p):
    """Batched PPO policy forward.  x: (B, STATE_DIM); weights pre-packed."""
    B = x.shape[0]
    block_b = _choose_block_b(B)
    nb = -(-B // block_b)
    b_pad = nb * block_b

    # Minimal pad + transpose so the batch sits on the 128-lane axis.
    x_t = jnp.pad(x.astype(jnp.float32), ((0, b_pad - B), (0, 0))).T  # (4, b_pad)

    out_t = pl.pallas_call(
        policy_kernel,
        out_shape=jax.ShapeDtypeStruct((ACTION_DIM, b_pad), jnp.float32),
        grid=(nb,),
        in_specs=[
            pl.BlockSpec((STATE_DIM, block_b), lambda i: (0, i)),            # x tile
            pl.BlockSpec((HIDDEN_DIM, STATE_DIM + 1), lambda i: (0, 0)),     # resident
            pl.BlockSpec((ACTION_DIM, HIDDEN_DIM + 1), lambda i: (0, 0)),    # resident
        ],
        out_specs=pl.BlockSpec((ACTION_DIM, block_b), lambda i: (0, i)),
        compiler_params=pltpu.CompilerParams(
            dimension_semantics=("parallel",)),   # 2x on v7x megacore; no-op elsewhere
    )(x_t, w1p, w2p)

    return out_t[:, :B].T                                           # (B, ACTION_DIM)


def init_params(key):
    # Deterministic synthetic init (PyTorch-style uniform bounds), not a checkpoint.
    k1, k2, k3, k4 = jax.random.split(key, 4)
    bound1 = 1.0 / jnp.sqrt(STATE_DIM)
    bound2 = 1.0 / jnp.sqrt(HIDDEN_DIM)
    w1 = jax.random.uniform(k1, (STATE_DIM, HIDDEN_DIM), jnp.float32, -bound1, bound1)
    b1 = jax.random.uniform(k2, (HIDDEN_DIM,), jnp.float32, -bound1, bound1)
    w2 = jax.random.uniform(k3, (HIDDEN_DIM, ACTION_DIM), jnp.float32, -bound2, bound2)
    b2 = jax.random.uniform(k4, (ACTION_DIM,), jnp.float32, -bound2, bound2)
    return w1, b1, w2, b2


def reference_forward(x, w1, b1, w2, b2):
    hi = jax.lax.Precision.HIGHEST   # f32-accurate reference matmuls on TPU
    h = jnp.maximum(jnp.dot(x, w1, precision=hi) + b1, 0.0)
    logits = jnp.dot(h, w2, precision=hi) + b2
    return jax.nn.softmax(logits, axis=-1)


if __name__ == "__main__":
    key = jax.random.PRNGKey(0)
    kx1, kx2, kp = jax.random.split(key, 3)
    w1, b1, w2, b2 = init_params(kp)
    w1p, w2p = prepack_params(w1, b1, w2, b2)   # one-time prepack

    fwd = jax.jit(policy_forward)

    # Small rollout: single 512-wide grid step (B=500 -> pad 12 rows).
    B1 = 500
    x1 = jax.random.normal(kx1, (B1, STATE_DIM), jnp.float32)
    out1 = jax.block_until_ready(fwd(x1, w1p, w2p))
    ref1 = reference_forward(x1, w1, b1, w2, b2)
    assert out1.shape == (B1, ACTION_DIM)
    assert jnp.allclose(out1, ref1, atol=1e-5, rtol=1e-5)
    assert jnp.allclose(jnp.sum(out1, axis=-1), 1.0, atol=1e-5)

    # Larger rollout: 2-step grid (exercises the parallel grid axis + padding).
    B2 = 1037
    x2 = jax.random.normal(kx2, (B2, STATE_DIM), jnp.float32)
    out2 = jax.block_until_ready(fwd(x2, w1p, w2p))
    ref2 = reference_forward(x2, w1, b1, w2, b2)
    assert out2.shape == (B2, ACTION_DIM)
    assert jnp.allclose(out2, ref2, atol=1e-5, rtol=1e-5)
    assert jnp.allclose(jnp.sum(out2, axis=-1), 1.0, atol=1e-5)

    print("KERNEL_OK")
</pallas_src>

<mosaic_0001>
module attributes {stable_mosaic.version = 11 : i64} {
  func.func @policy_kernel(%arg0: i32, %arg1: memref<4x512xf32, #tpu.memory_space<vmem>>, %arg2: memref<64x5xf32, #tpu.memory_space<vmem>>, %arg3: memref<2x65xf32, #tpu.memory_space<vmem>>, %arg4: memref<2x512xf32, #tpu.memory_space<vmem>>) attributes {dimension_semantics = [#tpu.dimension_semantics<parallel>], iteration_bounds = array<i64: 1>, scalar_prefetch = 0 : i64, scratch_operands = 0 : i64, tpu.core_type = #tpu.core_type<tc>, window_params = [{transform_indices = @transform_0, window_bounds = array<i64: 4, 512>}, {pipeline_mode = #tpu.pipeline_mode<synchronous>, transform_indices = @transform_1, window_bounds = array<i64: 64, 5>}, {pipeline_mode = #tpu.pipeline_mode<synchronous>, transform_indices = @transform_2, window_bounds = array<i64: 2, 65>}, {transform_indices = @transform_3, window_bounds = array<i64: 2, 512>}]} {
    %c0 = arith.constant 0 : index
    %c0_0 = arith.constant 0 : index
    %0 = vector.load %arg1[%c0, %c0_0] : memref<4x512xf32, #tpu.memory_space<vmem>>, vector<4x512xf32>
    %c0_1 = arith.constant 0 : index
    %c0_2 = arith.constant 0 : index
    %1 = vector.load %arg2[%c0_1, %c0_2] : memref<64x5xf32, #tpu.memory_space<vmem>>, vector<64x5xf32>
    %c0_3 = arith.constant 0 : index
    %c0_4 = arith.constant 0 : index
    %2 = vector.load %arg3[%c0_3, %c0_4] : memref<2x65xf32, #tpu.memory_space<vmem>>, vector<2x65xf32>
    %3 = vector.extract_strided_slice %1 {offsets = [0, 0], sizes = [64, 4], strides = [1, 1]} : vector<64x5xf32> to vector<64x4xf32>
    %cst = arith.constant dense<0.000000e+00> : vector<64x512xf32>
    %4 = tpu.matmul %3, %0, %cst {dimension_numbers = #tpu.dot_dimension_numbers<[1], [0], [0], [1], [0, 0, 1, 1], [], []>, precision = #tpu.contract_precision<fp32>} : vector<64x4xf32>, vector<4x512xf32>, vector<64x512xf32> -> vector<64x512xf32>
    %5 = vector.extract_strided_slice %1 {offsets = [0, 4], sizes = [64, 1], strides = [1, 1]} : vector<64x5xf32> to vector<64x1xf32>
    %6 = vector.broadcast %5 : vector<64x1xf32> to vector<64x512xf32>
    %7 = arith.addf %4, %6 : vector<64x512xf32>
    %cst_5 = arith.constant 0.000000e+00 : f32
    %8 = vector.broadcast %cst_5 : f32 to vector<64x512xf32>
    %9 = arith.maximumf %7, %8 : vector<64x512xf32>
    %10 = vector.extract_strided_slice %2 {offsets = [0, 0], sizes = [2, 64], strides = [1, 1]} : vector<2x65xf32> to vector<2x64xf32>
    %cst_6 = arith.constant dense<0.000000e+00> : vector<2x512xf32>
    %11 = tpu.matmul %10, %9, %cst_6 {dimension_numbers = #tpu.dot_dimension_numbers<[1], [0], [0], [1], [0, 0, 1, 1], [], []>, precision = #tpu.contract_precision<fp32>} : vector<2x64xf32>, vector<64x512xf32>, vector<2x512xf32> -> vector<2x512xf32>
    %12 = vector.extract_strided_slice %2 {offsets = [0, 64], sizes = [2, 1], strides = [1, 1]} : vector<2x65xf32> to vector<2x1xf32>
    %13 = vector.broadcast %12 : vector<2x1xf32> to vector<2x512xf32>
    %14 = arith.addf %11, %13 : vector<2x512xf32>
    %15 = vector.extract_strided_slice %14 {offsets = [1, 0], sizes = [1, 512], strides = [1, 1]} : vector<2x512xf32> to vector<1x512xf32>
    %16 = vector.extract_strided_slice %14 {offsets = [0, 0], sizes = [1, 512], strides = [1, 1]} : vector<2x512xf32> to vector<1x512xf32>
    %17 = arith.subf %15, %16 : vector<1x512xf32>
    %18 = math.exp %17 : vector<1x512xf32>
    %cst_7 = arith.constant 1.000000e+00 : f32
    %19 = vector.broadcast %cst_7 : f32 to vector<1x512xf32>
    %20 = arith.addf %19, %18 : vector<1x512xf32>
    %21 = tpu.reciprocal %20 {approx = true} : vector<1x512xf32> -> vector<1x512xf32>
    %22 = arith.mulf %20, %21 : vector<1x512xf32>
    %cst_8 = arith.constant 2.000000e+00 : f32
    %23 = vector.broadcast %cst_8 : f32 to vector<1x512xf32>
    %24 = arith.subf %23, %22 : vector<1x512xf32>
    %25 = arith.mulf %21, %24 : vector<1x512xf32>
    %c0_9 = arith.constant 0 : index
    %c0_10 = arith.constant 0 : index
    %26 = vector.load %arg4[%c0_9, %c0_10] : memref<2x512xf32, #tpu.memory_space<vmem>>, vector<1x512xf32>
    tpu.vector_store %arg4[%c0_9, %c0_10], %25 {strides = array<i32>} : memref<2x512xf32, #tpu.memory_space<vmem>>, vector<1x512xf32>,
    %cst_11 = arith.constant 1.000000e+00 : f32
    %27 = vector.broadcast %cst_11 : f32 to vector<1x512xf32>
    %28 = arith.subf %27, %25 : vector<1x512xf32>
    %c1 = arith.constant 1 : index
    %c0_12 = arith.constant 0 : index
    %29 = vector.load %arg4[%c1, %c0_12] : memref<2x512xf32, #tpu.memory_space<vmem>>, vector<1x512xf32>
    tpu.vector_store %arg4[%c1, %c0_12], %28 {strides = array<i32>} : memref<2x512xf32, #tpu.memory_space<vmem>>, vector<1x512xf32>,
    return
  }
  func.func @transform_0(%arg0: i32) -> (i32, i32) {
    %c0_i32 = arith.constant 0 : i32
    %c0_i32_0 = arith.constant 0 : i32
    return %c0_i32, %arg0 : i32, i32
  }
  func.func @transform_1(%arg0: i32) -> (i32, i32) {
    %c0_i32 = arith.constant 0 : i32
    %c0_i32_0 = arith.constant 0 : i32
    %c0_i32_1 = arith.constant 0 : i32
    return %c0_i32, %c0_i32_0 : i32, i32
  }
  func.func @transform_2(%arg0: i32) -> (i32, i32) {
    %c0_i32 = arith.constant 0 : i32
    %c0_i32_0 = arith.constant 0 : i32
    %c0_i32_1 = arith.constant 0 : i32
    return %c0_i32, %c0_i32_0 : i32, i32
  }
  func.func @transform_3(%arg0: i32) -> (i32, i32) {
    %c0_i32 = arith.constant 0 : i32
    %c0_i32_0 = arith.constant 0 : i32
    return %c0_i32, %arg0 : i32, i32
  }
}

</mosaic_0001>

<llo_original>
// kernel: policy_forward.1
$region0: #{policy_forward.1}
  #allocation0 [shape = 'u32[]', space=smem, size = 0x4, offset = 0x4, fixed_abs, tag = 'smem constant byte address 0x4 - core index']
  #allocation1 [shape = 'u32[144,128]{1,0:T(1,128)}', space=vmem, size = 0x12000, scoped, tag = 'internal scratch']
  %s0 = inlined_call_operand.vmem [shape: f32[4,512], index: 0, kind: input, shape index: {}]
  %s1 = inlined_call_operand.vmem [shape: f32[64,5], index: 1, kind: input, shape index: {}]
  %s2 = inlined_call_operand.vmem [shape: f32[2,65], index: 2, kind: input, shape index: {}]
  %s3 = inlined_call_operand.vmem [shape: f32[2,512], index: 3, kind: output, shape index: {}]
  %s4 = sld [smem:[#allocation0]]
  $region22: #{policy_forward.1} parent=0
    _
  %s6 = ssub.s32 1, %s4
  %s7 = scalar_select 0, %s6, %s4
  // Predicated region
  $region2: #{policy_forward.1} parent=0 // pred_check
    _
  $region3: #{policy_forward.1} parent=0 // pred_check_branch
    %9 = sbr.rel (0) target = $region5
  $region4: #{policy_forward.1} parent=0 // pred_region
    _
  $region5: #{policy_forward.1} parent=0 // pred_fallthru
    _
  // Predicated region
  $region6: #{policy_forward.1} parent=0 // pred_check
    _
  $region7: #{policy_forward.1} parent=0 // pred_check_branch
    %11 = sbr.rel (0) target = $region9
  $region8: #{policy_forward.1} parent=0 // pred_region
    _
  $region9: #{policy_forward.1} parent=0 // pred_fallthru
    _
  // Predicated region
  $region10: #{policy_forward.1} parent=0 // pred_check
    _
  $region11: #{policy_forward.1} parent=0 // pred_check_branch
    %13 = sbr.rel (0) target = $region13
  $region12: #{policy_forward.1} parent=0 // pred_region
    _
  $region13: #{policy_forward.1} parent=0 // pred_fallthru
    _
  %v14 = vld [vmem:[%s0] sm:$0xff]
  %v15 = vld [vmem:[%s0 + $0x8] sm:$0xff]
  %v16 = vld [vmem:[%s1] sm:$0xff]
  %v17 = vld [vmem:[%s1 + $0x8] sm:$0xff]
  %v18 = vld [vmem:[%s1 + $0x10] sm:$0xff]
  %v19 = vld [vmem:[%s1 + $0x18] sm:$0xff]
  %v20 = vld [vmem:[%s1 + $0x20] sm:$0xff]
  %v21 = vld [vmem:[%s1 + $0x28] sm:$0xff]
  %v22 = vld [vmem:[%s1 + $0x30] sm:$0xff]
  %v23 = vld [vmem:[%s1 + $0x38] sm:$0xff]
  %v24 = vld [vmem:[%s2] sm:$0x3]
  %26 = vset.pattern.permute.xlu0 4
  %27 = vperm.xlu0 %26, %v16
  %v28 = vpop.permute.xlu0 %27
  %31 = vset.pattern.permute.xlu0 4
  %32 = vperm.xlu0 %31, %v17
  %v33 = vpop.permute.xlu0 %32
  %36 = vset.pattern.permute.xlu0 4
  %37 = vperm.xlu0 %36, %v18
  %v38 = vpop.permute.xlu0 %37
  %41 = vset.pattern.permute.xlu0 4
  %42 = vperm.xlu0 %41, %v19
  %v43 = vpop.permute.xlu0 %42
  %46 = vset.pattern.permute.xlu0 4
  %47 = vperm.xlu0 %46, %v20
  %v48 = vpop.permute.xlu0 %47
  %51 = vset.pattern.permute.xlu0 4
  %52 = vperm.xlu0 %51, %v21
  %v53 = vpop.permute.xlu0 %52
  %56 = vset.pattern.permute.xlu0 4
  %57 = vperm.xlu0 %56, %v22
  %v58 = vpop.permute.xlu0 %57
  %61 = vset.pattern.permute.xlu0 4
  %62 = vperm.xlu0 %61, %v23
  %v63 = vpop.permute.xlu0 %62
  %v67 = vcombine.high %v14, %v14
  %v68 = vcombine.high %v15, %v15
  %vm69 = vcmask 31744
  %v70 = vsel %vm69, %v16, 0
  %v72 = vsel %vm69, %v17, 0
  %v74 = vsel %vm69, %v18, 0
  %v76 = vsel %vm69, %v19, 0
  %v78 = vsel %vm69, %v20, 0
  %v80 = vsel %vm69, %v21, 0
  %v82 = vsel %vm69, %v22, 0
  %v84 = vsel %vm69, %v23, 0
  %vm86 = vcmask 1043456
  %v87 = vsel %vm86, %v14, 0
  %v89 = vsel %vm86, %v67, 0
  %v91 = vsel %vm86, %v15, 0
  %v93 = vsel %vm86, %v68, 0
  %v95 = vand.u32 %v89, 4294901760
  %96 = vmatprep.subr.mxu0 %v95
  %v97 = vand.u32 %v87, 4294901760
  %98 = vmatpush1.msra.mxu0 %v97
  %99 = vmatprep.subr.mxu0 0.0
  %100 = vmatpush1.msra.mxu0 0.0
  %101 = vmatprep.subr.mxu0 0.0
  %102 = vmatpush1.msra.mxu0 0.0
  %103 = vmatprep.subr.mxu0 0.0
  %104 = vmatpush1.msra.mxu0 0.0
  %105 = vmatprep.subr.mxu0 0.0
  %106 = vmatpush1.msra.mxu0 0.0
  %107 = vmatprep.subr.mxu0 0.0
  %108 = vmatpush1.msra.mxu0 0.0
  %109 = vmatprep.subr.mxu0 0.0
  %110 = vmatpush1.msra.mxu0 0.0
  %111 = vmatprep.subr.mxu0 0.0
  %112 = vmatpush1.msra.mxu0 0.0
  %113 = vmatprep.subr.mxu0 0.0
  %114 = vmatpush1.msra.mxu0 0.0
  %115 = vmatprep.subr.mxu0 0.0
  %116 = vmatpush1.msra.mxu0 0.0
  %117 = vmatprep.subr.mxu0 0.0
  %118 = vmatpush1.msra.mxu0 0.0
  %119 = vmatprep.subr.mxu0 0.0
  %120 = vmatpush1.msra.mxu0 0.0
  %121 = vmatprep.subr.mxu0 0.0
  %122 = vmatpush1.msra.mxu0 0.0
  %123 = vmatprep.subr.mxu0 0.0
  %124 = vmatpush1.msra.mxu0 0.0
  %125 = vmatprep.subr.mxu0 0.0
  %126 = vmatpush1.msra.mxu0 0.0
  %127 = vmatprep.subr.mxu0 0.0
  %128 = vmatpush1.msra.mxu0 0.0
  %129 = vmatprep.subr.mxu0 0.0
  %130 = vmatpush1.msra.mxu0 0.0
  %131 = vmatprep.subr.mxu0 0.0
  %132 = vmatpush1.msra.mxu0 0.0
  %133 = vmatprep.subr.mxu0 0.0
  %134 = vmatpush1.msra.mxu0 0.0
  %135 = vmatprep.subr.mxu0 0.0
  %136 = vmatpush1.msra.mxu0 0.0
  %137 = vmatprep.subr.mxu0 0.0
  %138 = vmatpush1.msra.mxu0 0.0
  %139 = vmatprep.subr.mxu0 0.0
  %140 = vmatpush1.msra.mxu0 0.0
  %141 = vmatprep.subr.mxu0 0.0
  %142 = vmatpush1.msra.mxu0 0.0
  %143 = vmatprep.subr.mxu0 0.0
  %144 = vmatpush1.msra.mxu0 0.0
  %145 = vmatprep.subr.mxu0 0.0
  %146 = vmatpush1.msra.mxu0 0.0
  %147 = vmatprep.subr.mxu0 0.0
  %148 = vmatpush1.msra.mxu0 0.0
  %149 = vmatprep.subr.mxu0 0.0
  %150 = vmatpush1.msra.mxu0 0.0
  %151 = vmatprep.subr.mxu0 0.0
  %152 = vmatpush1.msra.mxu0 0.0
  %153 = vmatprep.subr.mxu0 0.0
  %154 = vmatpush1.msra.mxu0 0.0
  %155 = vmatprep.subr.mxu0 0.0
  %156 = vmatpush1.msra.mxu0 0.0
  %157 = vmatprep.subr.mxu0 0.0
  %158 = vmatpush1.msra.mxu0 0.0
  %159 = vmatprep.subr.mxu0 0.0
  %160 = vmatpush1.msra.mxu0 0.0
  %161 = vmatprep.mubr.f32.mxu0 0.0
  %v162 = vand.u32 %v70, 4294901760
  %v163 = vsub.f32 %v70, %v162
  %v164 = vand.u32 %v163, 4294901760
  %v165 = vsub.f32 %v163, %v164
  %v166 = vand.u32 %v165, 4294901760
  %167 = vmatmul.mubr.f32.gmra.mrb[0].mxu0 %v166
  %v168 = vpop.f32.mrb[0].mxu0
  %v169 = vadd.f32 %v28, %v168
  %v170 = vpop.f32.mrb[0].mxu0
  %v171 = vadd.f32 %v28, %v170
  %172 = vmatprep.mubr.f32.mxu0 0.0
  %v173 = vand.u32 %v72, 4294901760
  %v174 = vsub.f32 %v72, %v173
  %v175 = vand.u32 %v174, 4294901760
  %v176 = vsub.f32 %v174, %v175
  %v177 = vand.u32 %v176, 4294901760
  %178 = vmatmul.mubr.f32.gmra.mrb[0].mxu0 %v177
  %v179 = vpop.f32.mrb[0].mxu0
  %v180 = vadd.f32 %v33, %v179
  %v181 = vpop.f32.mrb[0].mxu0
  %v182 = vadd.f32 %v33, %v181
  %183 = vmatprep.mubr.f32.mxu0 0.0
  %v184 = vand.u32 %v74, 4294901760
  %v185 = vsub.f32 %v74, %v184
  %v186 = vand.u32 %v185, 4294901760
  %v187 = vsub.f32 %v185, %v186
  %v188 = vand.u32 %v187, 4294901760
  %189 = vmatmul.mubr.f32.gmra.mrb[0].mxu0 %v188
  %v190 = vpop.f32.mrb[0].mxu0
  %v191 = vadd.f32 %v38, %v190
  %v192 = vpop.f32.mrb[0].mxu0
  %v193 = vadd.f32 %v38, %v192
  %194 = vmatprep.mubr.f32.mxu0 0.0
  %v195 = vand.u32 %v76, 4294901760
  %v196 = vsub.f32 %v76, %v195
  %v197 = vand.u32 %v196, 4294901760
  %v198 = vsub.f32 %v196, %v197
  %v199 = vand.u32 %v198, 4294901760
  %200 = vmatmul.mubr.f32.gmra.mrb[0].mxu0 %v199
  %v201 = vpop.f32.mrb[0].mxu0
  %v202 = vadd.f32 %v43, %v201
  %v203 = vpop.f32.mrb[0].mxu0
  %v204 = vadd.f32 %v43, %v203
  %205 = vmatprep.mubr.f32.mxu0 0.0
  %v206 = vand.u32 %v78, 4294901760
  %v207 = vsub.f32 %v78, %v206
  %v208 = vand.u32 %v207, 4294901760
  %v209 = vsub.f32 %v207, %v208
  %v210 = vand.u32 %v209, 4294901760
  %211 = vmatmul.mubr.f32.gmra.mrb[0].mxu0 %v210
  %v212 = vpop.f32.mrb[0].mxu0
  %v213 = vadd.f32 %v48, %v212
  %v214 = vpop.f32.mrb[0].mxu0
  %v215 = vadd.f32 %v48, %v214
  %216 = vmatprep.mubr.f32.mxu0 0.0
  %v217 = vand.u32 %v80, 4294901760
  %v218 = vsub.f32 %v80, %v217
  %v219 = vand.u32 %v218, 4294901760
  %v220 = vsub.f32 %v218, %v219
  %v221 = vand.u32 %v220, 4294901760
  %222 = vmatmul.mubr.f32.gmra.mrb[0].mxu0 %v221
  %v223 = vpop.f32.mrb[0].mxu0
  %v224 = vadd.f32 %v53, %v223
  %v225 = vpop.f32.mrb[0].mxu0
  %v226 = vadd.f32 %v53, %v225
  %227 = vmatprep.mubr.f32.mxu0 0.0
  %v228 = vand.u32 %v82, 4294901760
  %v229 = vsub.f32 %v82, %v228
  %v230 = vand.u32 %v229, 4294901760
  %v231 = vsub.f32 %v229, %v230
  %v232 = vand.u32 %v231, 4294901760
  %233 = vmatmul.mubr.f32.gmra.mrb[0].mxu0 %v232
  %v234 = vpop.f32.mrb[0].mxu0
  %v235 = vadd.f32 %v58, %v234
  %v236 = vpop.f32.mrb[0].mxu0
  %v237 = vadd.f32 %v58, %v236
  %238 = vmatprep.mubr.f32.mxu0 0.0
  %v239 = vand.u32 %v84, 4294901760
  %v240 = vsub.f32 %v84, %v239
  %v241 = vand.u32 %v240, 4294901760
  %v242 = vsub.f32 %v240, %v241
  %v243 = vand.u32 %v242, 4294901760
  %244 = vmatmul.mubr.f32.gmra.mrb[0].mxu0 %v243
  %v245 = vpop.f32.mrb[0].mxu0
  %v246 = vadd.f32 %v63, %v245
  %v247 = vpop.f32.mrb[0].mxu0
  %v248 = vadd.f32 %v63, %v247
  %249 = vdwg.mxu0
  %v250 = vand.u32 %v89, 4294901760
  %v251 = vsub.f32 %v89, %v250
  %v252 = vand.u32 %v251, 4294901760
  %v253 = vsub.f32 %v251, %v252
  %v254 = vand.u32 %v253, 4294901760
  %255 = vmatprep.subr.mxu0 %v254
  %v256 = vand.u32 %v87, 4294901760
  %v257 = vsub.f32 %v87, %v256
  %v258 = vand.u32 %v257, 4294901760
  %v259 = vsub.f32 %v257, %v258
  %v260 = vand.u32 %v259, 4294901760
  %261 = vmatpush1.msra.mxu0 %v260
  %262 = vmatprep.subr.mxu0 0.0
  %263 = vmatpush1.msra.mxu0 0.0
  %264 = vmatprep.subr.mxu0 0.0
  %265 = vmatpush1.msra.mxu0 0.0
  %266 = vmatprep.subr.mxu0 0.0
  %267 = vmatpush1.msra.mxu0 0.0
  %268 = vmatprep.subr.mxu0 0.0
  %269 = vmatpush1.msra.mxu0 0.0
  %270 = vmatprep.subr.mxu0 0.0
  %271 = vmatpush1.msra.mxu0 0.0
  %272 = vmatprep.subr.mxu0 0.0
  %273 = vmatpush1.msra.mxu0 0.0
  %274 = vmatprep.subr.mxu0 0.0
  %275 = vmatpush1.msra.mxu0 0.0
  %276 = vmatprep.subr.mxu0 0.0
  %277 = vmatpush1.msra.mxu0 0.0
  %278 = vmatprep.subr.mxu0 0.0
  %279 = vmatpush1.msra.mxu0 0.0
  %280 = vmatprep.subr.mxu0 0.0
  %281 = vmatpush1.msra.mxu0 0.0
  %282 = vmatprep.subr.mxu0 0.0
  %283 = vmatpush1.msra.mxu0 0.0
  %284 = vmatprep.subr.mxu0 0.0
  %285 = vmatpush1.msra.mxu0 0.0
  %286 = vmatprep.subr.mxu0 0.0
  %287 = vmatpush1.msra.mxu0 0.0
  %288 = vmatprep.subr.mxu0 0.0
  %289 = vmatpush1.msra.mxu0 0.0
  %290 = vmatprep.subr.mxu0 0.0
  %291 = vmatpush1.msra.mxu0 0.0
  %292 = vmatprep.subr.mxu0 0.0
  %293 = vmatpush1.msra.mxu0 0.0
  %294 = vmatprep.subr.mxu0 0.0
  %295 = vmatpush1.msra.mxu0 0.0
  %296 = vmatprep.subr.mxu0 0.0
  %297 = vmatpush1.msra.mxu0 0.0
  %298 = vmatprep.subr.mxu0 0.0
  %299 = vmatpush1.msra.mxu0 0.0
  %300 = vmatprep.subr.mxu0 0.0
  %301 = vmatpush1.msra.mxu0 0.0
  %302 = vmatprep.subr.mxu0 0.0
  %303 = vmatpush1.msra.mxu0 0.0
  %304 = vmatprep.subr.mxu0 0.0
  %305 = vmatpush1.msra.mxu0 0.0
  %306 = vmatprep.subr.mxu0 0.0
  %307 = vmatpush1.msra.mxu0 0.0
  %308 = vmatprep.subr.mxu0 0.0
  %309 = vmatpush1.msra.mxu0 0.0
  %310 = vmatprep.subr.mxu0 0.0
  %311 = vmatpush1.msra.mxu0 0.0
  %312 = vmatprep.subr.mxu0 0.0
  %313 = vmatpush1.msra.mxu0 0.0
  %314 = vmatprep.subr.mxu0 0.0
  %315 = vmatpush1.msra.mxu0 0.0
  %316 = vmatprep.subr.mxu0 0.0
  %317 = vmatpush1.msra.mxu0 0.0
  %318 = vmatprep.subr.mxu0 0.0
  %319 = vmatpush1.msra.mxu0 0.0
  %320 = vmatprep.subr.mxu0 0.0
  %321 = vmatpush1.msra.mxu0 0.0
  %322 = vmatprep.subr.mxu0 0.0
  %323 = vmatpush1.msra.mxu0 0.0
  %324 = vmatprep.mubr.f32.mxu0 0.0
  %v325 = vand.u32 %v70, 4294901760
  %326 = vmatmul.mubr.f32.gmra.mrb[0].mxu0 %v325
  %v327 = vpop.f32.mrb[0].mxu0
  %v328 = vadd.f32 %v169, %v327
  %v329 = vpop.f32.mrb[0].mxu0
  %v330 = vadd.f32 %v171, %v329
  %331 = vmatprep.mubr.f32.mxu0 0.0
  %v332 = vand.u32 %v72, 4294901760
  %333 = vmatmul.mubr.f32.gmra.mrb[0].mxu0 %v332
  %v334 = vpop.f32.mrb[0].mxu0
  %v335 = vadd.f32 %v180, %v334
  %v336 = vpop.f32.mrb[0].mxu0
  %v337 = vadd.f32 %v182, %v336
  %338 = vmatprep.mubr.f32.mxu0 0.0
  %v339 = vand.u32 %v74, 4294901760
  %340 = vmatmul.mubr.f32.gmra.mrb[0].mxu0 %v339
  %v341 = vpop.f32.mrb[0].mxu0
  %v342 = vadd.f32 %v191, %v341
  %v343 = vpop.f32.mrb[0].mxu0
  %v344 = vadd.f32 %v193, %v343
  %345 = vmatprep.mubr.f32.mxu0 0.0
  %v346 = vand.u32 %v76, 4294901760
  %347 = vmatmul.mubr.f32.gmra.mrb[0].mxu0 %v346
  %v348 = vpop.f32.mrb[0].mxu0
  %v349 = vadd.f32 %v202, %v348
  %v350 = vpop.f32.mrb[0].mxu0
  %v351 = vadd.f32 %v204, %v350
  %352 = vmatprep.mubr.f32.mxu0 0.0
  %v353 = vand.u32 %v78, 4294901760
  %354 = vmatmul.mubr.f32.gmra.mrb[0].mxu0 %v353
  %v355 = vpop.f32.mrb[0].mxu0
  %v356 = vadd.f32 %v213, %v355
  %v357 = vpop.f32.mrb[0].mxu0
  %v358 = vadd.f32 %v215, %v357
  %359 = vmatprep.mubr.f32.mxu0 0.0
  %v360 = vand.u32 %v80, 4294901760
  %361 = vmatmul.mubr.f32.gmra.mrb[0].mxu0 %v360
  %v362 = vpop.f32.mrb[0].mxu0
  %v363 = vadd.f32 %v224, %v362
  %v364 = vpop.f32.mrb[0].mxu0
  %v365 = vadd.f32 %v226, %v364
  %366 = vmatprep.mubr.f32.mxu0 0.0
  %v367 = vand.u32 %v82, 4294901760
  %368 = vmatmul.mubr.f32.gmra.mrb[0].mxu0 %v367
  %v369 = vpop.f32.mrb[0].mxu0
  %v370 = vadd.f32 %v235, %v369
  %v371 = vpop.f32.mrb[0].mxu0
  %v372 = vadd.f32 %v237, %v371
  %373 = vmatprep.mubr.f32.mxu0 0.0
  %v374 = vand.u32 %v84, 4294901760
  %375 = vmatmul.mubr.f32.gmra.mrb[0].mxu0 %v374
  %v376 = vpop.f32.mrb[0].mxu0
  %v377 = vadd.f32 %v246, %v376
  %v378 = vpop.f32.mrb[0].mxu0
  %v379 = vadd.f32 %v248, %v378
  %380 = vdwg.mxu0
  %v381 = vand.u32 %v89, 4294901760
  %v382 = vsub.f32 %v89, %v381
  %383 = vmatprep.subr.mxu0 %v382
  %v384 = vand.u32 %v87, 4294901760
  %v385 = vsub.f32 %v87, %v384
  %386 = vmatpush1.msra.mxu0 %v385
  %387 = vmatprep.subr.mxu0 0.0
  %388 = vmatpush1.msra.mxu0 0.0
  %389 = vmatprep.subr.mxu0 0.0
  %390 = vmatpush1.msra.mxu0 0.0
  %391 = vmatprep.subr.mxu0 0.0
  %392 = vmatpush1.msra.mxu0 0.0
  %393 = vmatprep.subr.mxu0 0.0
  %394 = vmatpush1.msra.mxu0 0.0
  %395 = vmatprep.subr.mxu0 0.0
  %396 = vmatpush1.msra.mxu0 0.0
  %397 = vmatprep.subr.mxu0 0.0
  %398 = vmatpush1.msra.mxu0 0.0
  %399 = vmatprep.subr.mxu0 0.0
  %400 = vmatpush1.msra.mxu0 0.0
  %401 = vmatprep.subr.mxu0 0.0
  %402 = vmatpush1.msra.mxu0 0.0
  %403 = vmatprep.subr.mxu0 0.0
  %404 = vmatpush1.msra.mxu0 0.0
  %405 = vmatprep.subr.mxu0 0.0
  %406 = vmatpush1.msra.mxu0 0.0
  %407 = vmatprep.subr.mxu0 0.0
  %408 = vmatpush1.msra.mxu0 0.0
  %409 = vmatprep.subr.mxu0 0.0
  %410 = vmatpush1.msra.mxu0 0.0
  %411 = vmatprep.subr.mxu0 0.0
  %412 = vmatpush1.msra.mxu0 0.0
  %413 = vmatprep.subr.mxu0 0.0
  %414 = vmatpush1.msra.mxu0 0.0
  %415 = vmatprep.subr.mxu0 0.0
  %416 = vmatpush1.msra.mxu0 0.0
  %417 = vmatprep.subr.mxu0 0.0
  %418 = vmatpush1.msra.mxu0 0.0
  %419 = vmatprep.subr.mxu0 0.0
  %420 = vmatpush1.msra.mxu0 0.0
  %421 = vmatprep.subr.mxu0 0.0
  %422 = vmatpush1.msra.mxu0 0.0
  %423 = vmatprep.subr.mxu0 0.0
  %424 = vmatpush1.msra.mxu0 0.0
  %425 = vmatprep.subr.mxu0 0.0
  %426 = vmatpush1.msra.mxu0 0.0
  %427 = vmatprep.subr.mxu0 0.0
  %428 = vmatpush1.msra.mxu0 0.0
  %429 = vmatprep.subr.mxu0 0.0
  %430 = vmatpush1.msra.mxu0 0.0
  %431 = vmatprep.subr.mxu0 0.0
  %432 = vmatpush1.msra.mxu0 0.0
  %433 = vmatprep.subr.mxu0 0.0
  %434 = vmatpush1.msra.mxu0 0.0
  %435 = vmatprep.subr.mxu0 0.0
  %436 = vmatpush1.msra.mxu0 0.0
  %437 = vmatprep.subr.mxu0 0.0
  %438 = vmatpush1.msra.mxu0 0.0
  %439 = vmatprep.subr.mxu0 0.0
  %440 = vmatpush1.msra.mxu0 0.0
  %441 = vmatprep.subr.mxu0 0.0
  %442 = vmatpush1.msra.mxu0 0.0
  %443 = vmatprep.subr.mxu0 0.0
  %444 = vmatpush1.msra.mxu0 0.0
  %445 = vmatprep.subr.mxu0 0.0
  %446 = vmatpush1.msra.mxu0 0.0
  %447 = vmatprep.subr.mxu0 0.0
  %448 = vmatpush1.msra.mxu0 0.0
  %449 = vmatprep.mubr.f32.mxu0 0.0
  %v450 = vand.u32 %v70, 4294901760
  %v451 = vsub.f32 %v70, %v450
  %452 = vmatmul.mubr.f32.gmra.mrb[0].mxu0 %v451
  %v453 = vpop.f32.mrb[0].mxu0
  %v454 = vadd.f32 %v328, %v453
  %v455 = vpop.f32.mrb[0].mxu0
  %v456 = vadd.f32 %v330, %v455
  %457 = vmatprep.mubr.f32.mxu0 0.0
  %v458 = vand.u32 %v72, 4294901760
  %v459 = vsub.f32 %v72, %v458
  %460 = vmatmul.mubr.f32.gmra.mrb[0].mxu0 %v459
  %v461 = vpop.f32.mrb[0].mxu0
  %v462 = vadd.f32 %v335, %v461
  %v463 = vpop.f32.mrb[0].mxu0
  %v464 = vadd.f32 %v337, %v463
  %465 = vmatprep.mubr.f32.mxu0 0.0
  %v466 = vand.u32 %v74, 4294901760
  %v467 = vsub.f32 %v74, %v466
  %468 = vmatmul.mubr.f32.gmra.mrb[0].mxu0 %v467
  %v469 = vpop.f32.mrb[0].mxu0
  %v470 = vadd.f32 %v342, %v469
  %v471 = vpop.f32.mrb[0].mxu0
  %v472 = vadd.f32 %v344, %v471
  %473 = vmatprep.mubr.f32.mxu0 0.0
  %v474 = vand.u32 %v76, 4294901760
  %v475 = vsub.f32 %v76, %v474
  %476 = vmatmul.mubr.f32.gmra.mrb[0].mxu0 %v475
  %v477 = vpop.f32.mrb[0].mxu0
  %v478 = vadd.f32 %v349, %v477
  %v479 = vpop.f32.mrb[0].mxu0
  %v480 = vadd.f32 %v351, %v479
  %481 = vmatprep.mubr.f32.mxu0 0.0
  %v482 = vand.u32 %v78, 4294901760
  %v483 = vsub.f32 %v78, %v482
  %484 = vmatmul.mubr.f32.gmra.mrb[0].mxu0 %v483
  %v485 = vpop.f32.mrb[0].mxu0
  %v486 = vadd.f32 %v356, %v485
  %v487 = vpop.f32.mrb[0].mxu0
  %v488 = vadd.f32 %v358, %v487
  %489 = vmatprep.mubr.f32.mxu0 0.0
  %v490 = vand.u32 %v80, 4294901760
  %v491 = vsub.f32 %v80, %v490
  %492 = vmatmul.mubr.f32.gmra.mrb[0].mxu0 %v491
  %v493 = vpop.f32.mrb[0].mxu0
  %v494 = vadd.f32 %v363, %v493
  %v495 = vpop.f32.mrb[0].mxu0
  %v496 = vadd.f32 %v365, %v495
  %497 = vmatprep.mubr.f32.mxu0 0.0
  %v498 = vand.u32 %v82, 4294901760
  %v499 = vsub.f32 %v82, %v498
  %500 = vmatmul.mubr.f32.gmra.mrb[0].mxu0 %v499
  %v501 = vpop.f32.mrb[0].mxu0
  %v502 = vadd.f32 %v370, %v501
  %v503 = vpop.f32.mrb[0].mxu0
  %v504 = vadd.f32 %v372, %v503
  %505 = vmatprep.mubr.f32.mxu0 0.0
  %v506 = vand.u32 %v84, 4294901760
  %v507 = vsub.f32 %v84, %v506
  %508 = vmatmul.mubr.f32.gmra.mrb[0].mxu0 %v507
  %v509 = vpop.f32.mrb[0].mxu0
  %v510 = vadd.f32 %v377, %v509
  %v511 = vpop.f32.mrb[0].mxu0
  %v512 = vadd.f32 %v379, %v511
  %513 = vdwg.mxu0
  %v514 = vand.u32 %v89, 4294901760
  %515 = vmatprep.subr.mxu0 %v514
  %v516 = vand.u32 %v87, 4294901760
  %517 = vmatpush1.msra.mxu0 %v516
  %518 = vmatprep.subr.mxu0 0.0
  %519 = vmatpush1.msra.mxu0 0.0
  %520 = vmatprep.subr.mxu0 0.0
  %521 = vmatpush1.msra.mxu0 0.0
  %522 = vmatprep.subr.mxu0 0.0
  %523 = vmatpush1.msra.mxu0 0.0
  %524 = vmatprep.subr.mxu0 0.0
  %525 = vmatpush1.msra.mxu0 0.0
  %526 = vmatprep.subr.mxu0 0.0
  %527 = vmatpush1.msra.mxu0 0.0
  %528 = vmatprep.subr.mxu0 0.0
  %529 = vmatpush1.msra.mxu0 0.0
  %530 = vmatprep.subr.mxu0 0.0
  %531 = vmatpush1.msra.mxu0 0.0
  %532 = vmatprep.subr.mxu0 0.0
  %533 = vmatpush1.msra.mxu0 0.0
  %534 = vmatprep.subr.mxu0 0.0
  %535 = vmatpush1.msra.mxu0 0.0
  %536 = vmatprep.subr.mxu0 0.0
  %537 = vmatpush1.msra.mxu0 0.0
  %538 = vmatprep.subr.mxu0 0.0
  %539 = vmatpush1.msra.mxu0 0.0
  %540 = vmatprep.subr.mxu0 0.0
  %541 = vmatpush1.msra.mxu0 0.0
  %542 = vmatprep.subr.mxu0 0.0
  %543 = vmatpush1.msra.mxu0 0.0
  %544 = vmatprep.subr.mxu0 0.0
  %545 = vmatpush1.msra.mxu0 0.0
  %546 = vmatprep.subr.mxu0 0.0
  %547 = vmatpush1.msra.mxu0 0.0
  %548 = vmatprep.subr.mxu0 0.0
  %549 = vmatpush1.msra.mxu0 0.0
  %550 = vmatprep.subr.mxu0 0.0
  %551 = vmatpush1.msra.mxu0 0.0
  %552 = vmatprep.subr.mxu0 0.0
  %553 = vmatpush1.msra.mxu0 0.0
  %554 = vmatprep.subr.mxu0 0.0
  %555 = vmatpush1.msra.mxu0 0.0
  %556 = vmatprep.subr.mxu0 0.0
  %557 = vmatpush1.msra.mxu0 0.0
  %558 = vmatprep.subr.mxu0 0.0
  %559 = vmatpush1.msra.mxu0 0.0
  %560 = vmatprep.subr.mxu0 0.0
  %561 = vmatpush1.msra.mxu0 0.0
  %562 = vmatprep.subr.mxu0 0.0
  %563 = vmatpush1.msra.mxu0 0.0
  %564 = vmatprep.subr.mxu0 0.0
  %565 = vmatpush1.msra.mxu0 0.0
  %566 = vmatprep.subr.mxu0 0.0
  %567 = vmatpush1.msra.mxu0 0.0
  %568 = vmatprep.subr.mxu0 0.0
  %569 = vmatpush1.msra.mxu0 0.0
  %570 = vmatprep.subr.mxu0 0.0
  %571 = vmatpush1.msra.mxu0 0.0
  %572 = vmatprep.subr.mxu0 0.0
  %573 = vmatpush1.msra.mxu0 0.0
  %574 = vmatprep.subr.mxu0 0.0
  %575 = vmatpush1.msra.mxu0 0.0
  %576 = vmatprep.subr.mxu0 0.0
  %577 = vmatpush1.msra.mxu0 0.0
  %578 = vmatprep.subr.mxu0 0.0
  %579 = vmatpush1.msra.mxu0 0.0
  %580 = vmatprep.mubr.f32.mxu0 0.0
  %v581 = vand.u32 %v70, 4294901760
  %v582 = vsub.f32 %v70, %v581
  %v583 = vand.u32 %v582, 4294901760
  %584 = vmatmul.mubr.f32.gmra.mrb[0].mxu0 %v583
  %v585 = vpop.f32.mrb[0].mxu0
  %v586 = vadd.f32 %v454, %v585
  %v587 = vpop.f32.mrb[0].mxu0
  %v588 = vadd.f32 %v456, %v587
  %589 = vmatprep.mubr.f32.mxu0 0.0
  %v590 = vand.u32 %v72, 4294901760
  %v591 = vsub.f32 %v72, %v590
  %v592 = vand.u32 %v591, 4294901760
  %593 = vmatmul.mubr.f32.gmra.mrb[0].mxu0 %v592
  %v594 = vpop.f32.mrb[0].mxu0
  %v595 = vadd.f32 %v462, %v594
  %v596 = vpop.f32.mrb[0].mxu0
  %v597 = vadd.f32 %v464, %v596
  %598 = vmatprep.mubr.f32.mxu0 0.0
  %v599 = vand.u32 %v74, 4294901760
  %v600 = vsub.f32 %v74, %v599
  %v601 = vand.u32 %v600, 4294901760
  %602 = vmatmul.mubr.f32.gmra.mrb[0].mxu0 %v601
  %v603 = vpop.f32.mrb[0].mxu0
  %v604 = vadd.f32 %v470, %v603
  %v605 = vpop.f32.mrb[0].mxu0
  %v606 = vadd.f32 %v472, %v605
  %607 = vmatprep.mubr.f32.mxu0 0.0
  %v608 = vand.u32 %v76, 4294901760
  %v609 = vsub.f32 %v76, %v608
  %v610 = vand.u32 %v609, 4294901760
  %611 = vmatmul.mubr.f32.gmra.mrb[0].mxu0 %v610
  %v612 = vpop.f32.mrb[0].mxu0
  %v613 = vadd.f32 %v478, %v612
  %v614 = vpop.f32.mrb[0].mxu0
  %v615 = vadd.f32 %v480, %v614
  %616 = vmatprep.mubr.f32.mxu0 0.0
  %v617 = vand.u32 %v78, 4294901760
  %v618 = vsub.f32 %v78, %v617
  %v619 = vand.u32 %v618, 4294901760
  %620 = vmatmul.mubr.f32.gmra.mrb[0].mxu0 %v619
  %v621 = vpop.f32.mrb[0].mxu0
  %v622 = vadd.f32 %v486, %v621
  %v623 = vpop.f32.mrb[0].mxu0
  %v624 = vadd.f32 %v488, %v623
  %625 = vmatprep.mubr.f32.mxu0 0.0
  %v626 = vand.u32 %v80, 4294901760
  %v627 = vsub.f32 %v80, %v626
  %v628 = vand.u32 %v627, 4294901760
  %629 = vmatmul.mubr.f32.gmra.mrb[0].mxu0 %v628
  %v630 = vpop.f32.mrb[0].mxu0
  %v631 = vadd.f32 %v494, %v630
  %v632 = vpop.f32.mrb[0].mxu0
  %v633 = vadd.f32 %v496, %v632
  %634 = vmatprep.mubr.f32.mxu0 0.0
  %v635 = vand.u32 %v82, 4294901760
  %v636 = vsub.f32 %v82, %v635
  %v637 = vand.u32 %v636, 4294901760
  %638 = vmatmul.mubr.f32.gmra.mrb[0].mxu0 %v637
  %v639 = vpop.f32.mrb[0].mxu0
  %v640 = vadd.f32 %v502, %v639
  %v641 = vpop.f32.mrb[0].mxu0
  %v642 = vadd.f32 %v504, %v641
  %643 = vmatprep.mubr.f32.mxu0 0.0
  %v644 = vand.u32 %v84, 4294901760
  %v645 = vsub.f32 %v84, %v644
  %v646 = vand.u32 %v645, 4294901760
  %647 = vmatmul.mubr.f32.gmra.mrb[0].mxu0 %v646
  %v648 = vpop.f32.mrb[0].mxu0
  %v649 = vadd.f32 %v510, %v648
  %v650 = vpop.f32.mrb[0].mxu0
  %v651 = vadd.f32 %v512, %v650
  %652 = vdwg.mxu0
  %v653 = vand.u32 %v89, 4294901760
  %v654 = vsub.f32 %v89, %v653
  %v655 = vand.u32 %v654, 4294901760
  %656 = vmatprep.subr.mxu0 %v655
  %v657 = vand.u32 %v87, 4294901760
  %v658 = vsub.f32 %v87, %v657
  %v659 = vand.u32 %v658, 4294901760
  %660 = vmatpush1.msra.mxu0 %v659
  %661 = vmatprep.subr.mxu0 0.0
  %662 = vmatpush1.msra.mxu0 0.0
  %663 = vmatprep.subr.mxu0 0.0
  %664 = vmatpush1.msra.mxu0 0.0
  %665 = vmatprep.subr.mxu0 0.0
  %666 = vmatpush1.msra.mxu0 0.0
  %667 = vmatprep.subr.mxu0 0.0
  %668 = vmatpush1.msra.mxu0 0.0
  %669 = vmatprep.subr.mxu0 0.0
  %670 = vmatpush1.msra.mxu0 0.0
  %671 = vmatprep.subr.mxu0 0.0
  %672 = vmatpush1.msra.mxu0 0.0
  %673 = vmatprep.subr.mxu0 0.0
  %674 = vmatpush1.msra.mxu0 0.0
  %675 = vmatprep.subr.mxu0 0.0
  %676 = vmatpush1.msra.mxu0 0.0
  %677 = vmatprep.subr.mxu0 0.0
  %678 = vmatpush1.msra.mxu0 0.0
  %679 = vmatprep.subr.mxu0 0.0
  %680 = vmatpush1.msra.mxu0 0.0
  %681 = vmatprep.subr.mxu0 0.0
  %682 = vmatpush1.msra.mxu0 0.0
  %683 = vmatprep.subr.mxu0 0.0
  %684 = vmatpush1.msra.mxu0 0.0
  %685 = vmatprep.subr.mxu0 0.0
  %686 = vmatpush1.msra.mxu0 0.0
  %687 = vmatprep.subr.mxu0 0.0
  %688 = vmatpush1.msra.mxu0 0.0
  %689 = vmatprep.subr.mxu0 0.0
  %690 = vmatpush1.msra.mxu0 0.0
  %691 = vmatprep.subr.mxu0 0.0
  %692 = vmatpush1.msra.mxu0 0.0
  %693 = vmatprep.subr.mxu0 0.0
  %694 = vmatpush1.msra.mxu0 0.0
  %695 = vmatprep.subr.mxu0 0.0
  %696 = vmatpush1.msra.mxu0 0.0
  %697 = vmatprep.subr.mxu0 0.0
  %698 = vmatpush1.msra.mxu0 0.0
  %699 = vmatprep.subr.mxu0 0.0
  %700 = vmatpush1.msra.mxu0 0.0
  %701 = vmatprep.subr.mxu0 0.0
  %702 = vmatpush1.msra.mxu0 0.0
  %703 = vmatprep.subr.mxu0 0.0
  %704 = vmatpush1.msra.mxu0 0.0
  %705 = vmatprep.subr.mxu0 0.0
  %706 = vmatpush1.msra.mxu0 0.0
  %707 = vmatprep.subr.mxu0 0.0
  %708 = vmatpush1.msra.mxu0 0.0
  %709 = vmatprep.subr.mxu0 0.0
  %710 = vmatpush1.msra.mxu0 0.0
  %711 = vmatprep.subr.mxu0 0.0
  %712 = vmatpush1.msra.mxu0 0.0
  %713 = vmatprep.subr.mxu0 0.0
  %714 = vmatpush1.msra.mxu0 0.0
  %715 = vmatprep.subr.mxu0 0.0
  %716 = vmatpush1.msra.mxu0 0.0
  %717 = vmatprep.subr.mxu0 0.0
  %718 = vmatpush1.msra.mxu0 0.0
  %719 = vmatprep.subr.mxu0 0.0
  %720 = vmatpush1.msra.mxu0 0.0
  %721 = vmatprep.subr.mxu0 0.0
  %722 = vmatpush1.msra.mxu0 0.0
  %723 = vmatprep.mubr.f32.mxu0 0.0
  %v724 = vand.u32 %v70, 4294901760
  %725 = vmatmul.mubr.f32.gmra.mrb[0].mxu0 %v724
  %v726 = vpop.f32.mrb[0].mxu0
  %v727 = vadd.f32 %v586, %v726
  %v728 = vpop.f32.mrb[0].mxu0
  %v729 = vadd.f32 %v588, %v728
  %730 = vmatprep.mubr.f32.mxu0 0.0
  %v731 = vand.u32 %v72, 4294901760
  %732 = vmatmul.mubr.f32.gmra.mrb[0].mxu0 %v731
  %v733 = vpop.f32.mrb[0].mxu0
  %v734 = vadd.f32 %v595, %v733
  %v735 = vpop.f32.mrb[0].mxu0
  %v736 = vadd.f32 %v597, %v735
  %737 = vmatprep.mubr.f32.mxu0 0.0
  %v738 = vand.u32 %v74, 4294901760
  %739 = vmatmul.mubr.f32.gmra.mrb[0].mxu0 %v738
  %v740 = vpop.f32.mrb[0].mxu0
  %v741 = vadd.f32 %v604, %v740
  %v742 = vpop.f32.mrb[0].mxu0
  %v743 = vadd.f32 %v606, %v742
  %744 = vmatprep.mubr.f32.mxu0 0.0
  %v745 = vand.u32 %v76, 4294901760
  %746 = vmatmul.mubr.f32.gmra.mrb[0].mxu0 %v745
  %v747 = vpop.f32.mrb[0].mxu0
  %v748 = vadd.f32 %v613, %v747
  %v749 = vpop.f32.mrb[0].mxu0
  %v750 = vadd.f32 %v615, %v749
  %751 = vmatprep.mubr.f32.mxu0 0.0
  %v752 = vand.u32 %v78, 4294901760
  %753 = vmatmul.mubr.f32.gmra.mrb[0].mxu0 %v752
  %v754 = vpop.f32.mrb[0].mxu0
  %v755 = vadd.f32 %v622, %v754
  %v756 = vpop.f32.mrb[0].mxu0
  %v757 = vadd.f32 %v624, %v756
  %758 = vmatprep.mubr.f32.mxu0 0.0
  %v759 = vand.u32 %v80, 4294901760
  %760 = vmatmul.mubr.f32.gmra.mrb[0].mxu0 %v759
  %v761 = vpop.f32.mrb[0].mxu0
  %v762 = vadd.f32 %v631, %v761
  %v763 = vpop.f32.mrb[0].mxu0
  %v764 = vadd.f32 %v633, %v763
  %765 = vmatprep.mubr.f32.mxu0 0.0
  %v766 = vand.u32 %v82, 4294901760
  %767 = vmatmul.mubr.f32.gmra.mrb[0].mxu0 %v766
  %v768 = vpop.f32.mrb[0].mxu0
  %v769 = vadd.f32 %v640, %v768
  %v770 = vpop.f32.mrb[0].mxu0
  %v771 = vadd.f32 %v642, %v770
  %772 = vmatprep.mubr.f32.mxu0 0.0
  %v773 = vand.u32 %v84, 4294901760
  %774 = vmatmul.mubr.f32.gmra.mrb[0].mxu0 %v773
  %v775 = vpop.f32.mrb[0].mxu0
  %v776 = vadd.f32 %v649, %v775
  %v777 = vpop.f32.mrb[0].mxu0
  %v778 = vadd.f32 %v651, %v777
  %779 = vdwg.mxu0
  %v780 = vand.u32 %v89, 4294901760
  %781 = vmatprep.subr.mxu0 %v780
  %v782 = vand.u32 %v87, 4294901760
  %783 = vmatpush1.msra.mxu0 %v782
  %784 = vmatprep.subr.mxu0 0.0
  %785 = vmatpush1.msra.mxu0 0.0
  %786 = vmatprep.subr.mxu0 0.0
  %787 = vmatpush1.msra.mxu0 0.0
  %788 = vmatprep.subr.mxu0 0.0
  %789 = vmatpush1.msra.mxu0 0.0
  %790 = vmatprep.subr.mxu0 0.0
  %791 = vmatpush1.msra.mxu0 0.0
  %792 = vmatprep.subr.mxu0 0.0
  %793 = vmatpush1.msra.mxu0 0.0
  %794 = vmatprep.subr.mxu0 0.0
  %795 = vmatpush1.msra.mxu0 0.0
  %796 = vmatprep.subr.mxu0 0.0
  %797 = vmatpush1.msra.mxu0 0.0
  %798 = vmatprep.subr.mxu0 0.0
  %799 = vmatpush1.msra.mxu0 0.0
  %800 = vmatprep.subr.mxu0 0.0
  %801 = vmatpush1.msra.mxu0 0.0
  %802 = vmatprep.subr.mxu0 0.0
  %803 = vmatpush1.msra.mxu0 0.0
  %804 = vmatprep.subr.mxu0 0.0
  %805 = vmatpush1.msra.mxu0 0.0
  %806 = vmatprep.subr.mxu0 0.0
  %807 = vmatpush1.msra.mxu0 0.0
  %808 = vmatprep.subr.mxu0 0.0
  %809 = vmatpush1.msra.mxu0 0.0
  %810 = vmatprep.subr.mxu0 0.0
  %811 = vmatpush1.msra.mxu0 0.0
  %812 = vmatprep.subr.mxu0 0.0
  %813 = vmatpush1.msra.mxu0 0.0
  %814 = vmatprep.subr.mxu0 0.0
  %815 = vmatpush1.msra.mxu0 0.0
  %816 = vmatprep.subr.mxu0 0.0
  %817 = vmatpush1.msra.mxu0 0.0
  %818 = vmatprep.subr.mxu0 0.0
  %819 = vmatpush1.msra.mxu0 0.0
  %820 = vmatprep.subr.mxu0 0.0
  %821 = vmatpush1.msra.mxu0 0.0
  %822 = vmatprep.subr.mxu0 0.0
  %823 = vmatpush1.msra.mxu0 0.0
  %824 = vmatprep.subr.mxu0 0.0
  %825 = vmatpush1.msra.mxu0 0.0
  %826 = vmatprep.subr.mxu0 0.0
  %827 = vmatpush1.msra.mxu0 0.0
  %828 = vmatprep.subr.mxu0 0.0
  %829 = vmatpush1.msra.mxu0 0.0
  %830 = vmatprep.subr.mxu0 0.0
  %831 = vmatpush1.msra.mxu0 0.0
  %832 = vmatprep.subr.mxu0 0.0
  %833 = vmatpush1.msra.mxu0 0.0
  %834 = vmatprep.subr.mxu0 0.0
  %835 = vmatpush1.msra.mxu0 0.0
  %836 = vmatprep.subr.mxu0 0.0
  %837 = vmatpush1.msra.mxu0 0.0
  %838 = vmatprep.subr.mxu0 0.0
  %839 = vmatpush1.msra.mxu0 0.0
  %840 = vmatprep.subr.mxu0 0.0
  %841 = vmatpush1.msra.mxu0 0.0
  %842 = vmatprep.subr.mxu0 0.0
  %843 = vmatpush1.msra.mxu0 0.0
  %844 = vmatprep.subr.mxu0 0.0
  %845 = vmatpush1.msra.mxu0 0.0
  %846 = vmatprep.mubr.f32.mxu0 0.0
  %v847 = vand.u32 %v70, 4294901760
  %848 = vmatmul.mubr.f32.gmra.mrb[0].mxu0 %v847
  %v849 = vpop.f32.mrb[0].mxu0
  %v850 = vadd.f32 %v727, %v849
  %v851 = vpop.f32.mrb[0].mxu0
  %v852 = vadd.f32 %v729, %v851
  %853 = vmatprep.mubr.f32.mxu0 0.0
  %v854 = vand.u32 %v72, 4294901760
  %855 = vmatmul.mubr.f32.gmra.mrb[0].mxu0 %v854
  %v856 = vpop.f32.mrb[0].mxu0
  %v857 = vadd.f32 %v734, %v856
  %v858 = vpop.f32.mrb[0].mxu0
  %v859 = vadd.f32 %v736, %v858
  %860 = vmatprep.mubr.f32.mxu0 0.0
  %v861 = vand.u32 %v74, 4294901760
  %862 = vmatmul.mubr.f32.gmra.mrb[0].mxu0 %v861
  %v863 = vpop.f32.mrb[0].mxu0
  %v864 = vadd.f32 %v741, %v863
  %v865 = vpop.f32.mrb[0].mxu0
  %v866 = vadd.f32 %v743, %v865
  %867 = vmatprep.mubr.f32.mxu0 0.0
  %v868 = vand.u32 %v76, 4294901760
  %869 = vmatmul.mubr.f32.gmra.mrb[0].mxu0 %v868
  %v870 = vpop.f32.mrb[0].mxu0
  %v871 = vadd.f32 %v748, %v870
  %v872 = vpop.f32.mrb[0].mxu0
  %v873 = vadd.f32 %v750, %v872
  %874 = vmatprep.mubr.f32.mxu0 0.0
  %v875 = vand.u32 %v78, 4294901760
  %876 = vmatmul.mubr.f32.gmra.mrb[0].mxu0 %v875
  %v877 = vpop.f32.mrb[0].mxu0
  %v878 = vadd.f32 %v755, %v877
  %v879 = vpop.f32.mrb[0].mxu0
  %v880 = vadd.f32 %v757, %v879
  %881 = vmatprep.mubr.f32.mxu0 0.0
  %v882 = vand.u32 %v80, 4294901760
  %883 = vmatmul.mubr.f32.gmra.mrb[0].mxu0 %v882
  %v884 = vpop.f32.mrb[0].mxu0
  %v885 = vadd.f32 %v762, %v884
  %v886 = vpop.f32.mrb[0].mxu0
  %v887 = vadd.f32 %v764, %v886
  %888 = vmatprep.mubr.f32.mxu0 0.0
  %v889 = vand.u32 %v82, 4294901760
  %890 = vmatmul.mubr.f32.gmra.mrb[0].mxu0 %v889
  %v891 = vpop.f32.mrb[0].mxu0
  %v892 = vadd.f32 %v769, %v891
  %v893 = vpop.f32.mrb[0].mxu0
  %v894 = vadd.f32 %v771, %v893
  %895 = vmatprep.mubr.f32.mxu0 0.0
  %v896 = vand.u32 %v84, 4294901760
  %897 = vmatmul.mubr.f32.gmra.mrb[0].mxu0 %v896
  %v898 = vpop.f32.mrb[0].mxu0
  %v899 = vadd.f32 %v776, %v898
  %v900 = vpop.f32.mrb[0].mxu0
  %v901 = vadd.f32 %v778, %v900
  %902 = vdwg.mxu0
  %v903 = vand.u32 %v93, 4294901760
  %904 = vmatprep.subr.mxu0 %v903
  %v905 = vand.u32 %v91, 4294901760
  %906 = vmatpush1.msra.mxu0 %v905
  %907 = vmatprep.subr.mxu0 0.0
  %908 = vmatpush1.msra.mxu0 0.0
  %909 = vmatprep.subr.mxu0 0.0
  %910 = vmatpush1.msra.mxu0 0.0
  %911 = vmatprep.subr.mxu0 0.0
  %912 = vmatpush1.msra.mxu0 0.0
  %913 = vmatprep.subr.mxu0 0.0
  %914 = vmatpush1.msra.mxu0 0.0
  %915 = vmatprep.subr.mxu0 0.0
  %916 = vmatpush1.msra.mxu0 0.0
  %917 = vmatprep.subr.mxu0 0.0
  %918 = vmatpush1.msra.mxu0 0.0
  %919 = vmatprep.subr.mxu0 0.0
  %920 = vmatpush1.msra.mxu0 0.0
  %921 = vmatprep.subr.mxu0 0.0
  %922 = vmatpush1.msra.mxu0 0.0
  %923 = vmatprep.subr.mxu0 0.0
  %924 = vmatpush1.msra.mxu0 0.0
  %925 = vmatprep.subr.mxu0 0.0
  %926 = vmatpush1.msra.mxu0 0.0
  %927 = vmatprep.subr.mxu0 0.0
  %928 = vmatpush1.msra.mxu0 0.0
  %929 = vmatprep.subr.mxu0 0.0
  %930 = vmatpush1.msra.mxu0 0.0
  %931 = vmatprep.subr.mxu0 0.0
  %932 = vmatpush1.msra.mxu0 0.0
  %933 = vmatprep.subr.mxu0 0.0
  %934 = vmatpush1.msra.mxu0 0.0
  %935 = vmatprep.subr.mxu0 0.0
  %936 = vmatpush1.msra.mxu0 0.0
  %937 = vmatprep.subr.mxu0 0.0
  %938 = vmatpush1.msra.mxu0 0.0
  %939 = vmatprep.subr.mxu0 0.0
  %940 = vmatpush1.msra.mxu0 0.0
  %941 = vmatprep.subr.mxu0 0.0
  %942 = vmatpush1.msra.mxu0 0.0
  %943 = vmatprep.subr.mxu0 0.0
  %944 = vmatpush1.msra.mxu0 0.0
  %945 = vmatprep.subr.mxu0 0.0
  %946 = vmatpush1.msra.mxu0 0.0
  %947 = vmatprep.subr.mxu0 0.0
  %948 = vmatpush1.msra.mxu0 0.0
  %949 = vmatprep.subr.mxu0 0.0
  %950 = vmatpush1.msra.mxu0 0.0
  %951 = vmatprep.subr.mxu0 0.0
  %952 = vmatpush1.msra.mxu0 0.0
  %953 = vmatprep.subr.mxu0 0.0
  %954 = vmatpush1.msra.mxu0 0.0
  %955 = vmatprep.subr.mxu0 0.0
  %956 = vmatpush1.msra.mxu0 0.0
  %957 = vmatprep.subr.mxu0 0.0
  %958 = vmatpush1.msra.mxu0 0.0
  %959 = vmatprep.subr.mxu0 0.0
  %960 = vmatpush1.msra.mxu0 0.0
  %961 = vmatprep.subr.mxu0 0.0
  %962 = vmatpush1.msra.mxu0 0.0
  %963 = vmatprep.subr.mxu0 0.0
  %964 = vmatpush1.msra.mxu0 0.0
  %965 = vmatprep.subr.mxu0 0.0
  %966 = vmatpush1.msra.mxu0 0.0
  %967 = vmatprep.subr.mxu0 0.0
  %968 = vmatpush1.msra.mxu0 0.0
  %969 = vmatprep.mubr.f32.mxu0 0.0
  %v970 = vand.u32 %v70, 4294901760
  %v971 = vsub.f32 %v70, %v970
  %v972 = vand.u32 %v971, 4294901760
  %v973 = vsub.f32 %v971, %v972
  %v974 = vand.u32 %v973, 4294901760
  %975 = vmatmul.mubr.f32.gmra.mrb[0].mxu0 %v974
  %v976 = vpop.f32.mrb[0].mxu0
  %v977 = vadd.f32 %v28, %v976
  %v978 = vpop.f32.mrb[0].mxu0
  %v979 = vadd.f32 %v28, %v978
  %980 = vmatprep.mubr.f32.mxu0 0.0
  %v981 = vand.u32 %v72, 4294901760
  %v982 = vsub.f32 %v72, %v981
  %v983 = vand.u32 %v982, 4294901760
  %v984 = vsub.f32 %v982, %v983
  %v985 = vand.u32 %v984, 4294901760
  %986 = vmatmul.mubr.f32.gmra.mrb[0].mxu0 %v985
  %v987 = vpop.f32.mrb[0].mxu0
  %v988 = vadd.f32 %v33, %v987
  %v989 = vpop.f32.mrb[0].mxu0
  %v990 = vadd.f32 %v33, %v989
  %991 = vmatprep.mubr.f32.mxu0 0.0
  %v992 = vand.u32 %v74, 4294901760
  %v993 = vsub.f32 %v74, %v992
  %v994 = vand.u32 %v993, 4294901760
  %v995 = vsub.f32 %v993, %v994
  %v996 = vand.u32 %v995, 4294901760
  %997 = vmatmul.mubr.f32.gmra.mrb[0].mxu0 %v996
  %v998 = vpop.f32.mrb[0].mxu0
  %v999 = vadd.f32 %v38, %v998
  %v1000 = vpop.f32.mrb[0].mxu0
  %v1001 = vadd.f32 %v38, %v1000
  %1002 = vmatprep.mubr.f32.mxu0 0.0
  %v1003 = vand.u32 %v76, 4294901760
  %v1004 = vsub.f32 %v76, %v1003
  %v1005 = vand.u32 %v1004, 4294901760
  %v1006 = vsub.f32 %v1004, %v1005
  %v1007 = vand.u32 %v1006, 4294901760
  %1008 = vmatmul.mubr.f32.gmra.mrb[0].mxu0 %v1007
  %v1009 = vpop.f32.mrb[0].mxu0
  %v1010 = vadd.f32 %v43, %v1009
  %v1011 = vpop.f32.mrb[0].mxu0
  %v1012 = vadd.f32 %v43, %v1011
  %1013 = vmatprep.mubr.f32.mxu0 0.0
  %v1014 = vand.u32 %v78, 4294901760
  %v1015 = vsub.f32 %v78, %v1014
  %v1016 = vand.u32 %v1015, 4294901760
  %v1017 = vsub.f32 %v1015, %v1016
  %v1018 = vand.u32 %v1017, 4294901760
  %1019 = vmatmul.mubr.f32.gmra.mrb[0].mxu0 %v1018
  %v1020 = vpop.f32.mrb[0].mxu0
  %v1021 = vadd.f32 %v48, %v1020
  %v1022 = vpop.f32.mrb[0].mxu0
  %v1023 = vadd.f32 %v48, %v1022
  %1024 = vmatprep.mubr.f32.mxu0 0.0
  %v1025 = vand.u32 %v80, 4294901760
  %v1026 = vsub.f32 %v80, %v1025
  %v1027 = vand.u32 %v1026, 4294901760
  %v1028 = vsub.f32 %v1026, %v1027
  %v1029 = vand.u32 %v1028, 4294901760
  %1030 = vmatmul.mubr.f32.gmra.mrb[0].mxu0 %v1029
  %v1031 = vpop.f32.mrb[0].mxu0
  %v1032 = vadd.f32 %v53, %v1031
  %v1033 = vpop.f32.mrb[0].mxu0
  %v1034 = vadd.f32 %v53, %v1033
  %1035 = vmatprep.mubr.f32.mxu0 0.0
  %v1036 = vand.u32 %v82, 4294901760
  %v1037 = vsub.f32 %v82, %v1036
  %v1038 = vand.u32 %v1037, 4294901760
  %v1039 = vsub.f32 %v1037, %v1038
  %v1040 = vand.u32 %v1039, 4294901760
  %1041 = vmatmul.mubr.f32.gmra.mrb[0].mxu0 %v1040
  %v1042 = vpop.f32.mrb[0].mxu0
  %v1043 = vadd.f32 %v58, %v1042
  %v1044 = vpop.f32.mrb[0].mxu0
  %v1045 = vadd.f32 %v58, %v1044
  %1046 = vmatprep.mubr.f32.mxu0 0.0
  %v1047 = vand.u32 %v84, 4294901760
  %v1048 = vsub.f32 %v84, %v1047
  %v1049 = vand.u32 %v1048, 4294901760
  %v1050 = vsub.f32 %v1048, %v1049
  %v1051 = vand.u32 %v1050, 4294901760
  %1052 = vmatmul.mubr.f32.gmra.mrb[0].mxu0 %v1051
  %v1053 = vpop.f32.mrb[0].mxu0
  %v1054 = vadd.f32 %v63, %v1053
  %v1055 = vpop.f32.mrb[0].mxu0
  %v1056 = vadd.f32 %v63, %v1055
  %1057 = vdwg.mxu0
  %v1058 = vand.u32 %v93, 4294901760
  %v1059 = vsub.f32 %v93, %v1058
  %v1060 = vand.u32 %v1059, 4294901760
  %v1061 = vsub.f32 %v1059, %v1060
  %v1062 = vand.u32 %v1061, 4294901760
  %1063 = vmatprep.subr.mxu0 %v1062
  %v1064 = vand.u32 %v91, 4294901760
  %v1065 = vsub.f32 %v91, %v1064
  %v1066 = vand.u32 %v1065, 4294901760
  %v1067 = vsub.f32 %v1065, %v1066
  %v1068 = vand.u32 %v1067, 4294901760
  %1069 = vmatpush1.msra.mxu0 %v1068
  %1070 = vmatprep.subr.mxu0 0.0
  %1071 = vmatpush1.msra.mxu0 0.0
  %1072 = vmatprep.subr.mxu0 0.0
  %1073 = vmatpush1.msra.mxu0 0.0
  %1074 = vmatprep.subr.mxu0 0.0
  %1075 = vmatpush1.msra.mxu0 0.0
  %1076 = vmatprep.subr.mxu0 0.0
  %1077 = vmatpush1.msra.mxu0 0.0
  %1078 = vmatprep.subr.mxu0 0.0
  %1079 = vmatpush1.msra.mxu0 0.0
  %1080 = vmatprep.subr.mxu0 0.0
  %1081 = vmatpush1.msra.mxu0 0.0
  %1082 = vmatprep.subr.mxu0 0.0
  %1083 = vmatpush1.msra.mxu0 0.0
  %1084 = vmatprep.subr.mxu0 0.0
  %1085 = vmatpush1.msra.mxu0 0.0
  %1086 = vmatprep.subr.mxu0 0.0
  %1087 = vmatpush1.msra.mxu0 0.0
  %1088 = vmatprep.subr.mxu0 0.0
  %1089 = vmatpush1.msra.mxu0 0.0
  %1090 = vmatprep.subr.mxu0 0.0
  %1091 = vmatpush1.msra.mxu0 0.0
  %1092 = vmatprep.subr.mxu0 0.0
  %1093 = vmatpush1.msra.mxu0 0.0
  %1094 = vmatprep.subr.mxu0 0.0
  %1095 = vmatpush1.msra.mxu0 0.0
  %1096 = vmatprep.subr.mxu0 0.0
  %1097 = vmatpush1.msra.mxu0 0.0
  %1098 = vmatprep.subr.mxu0 0.0
  %1099 = vmatpush1.msra.mxu0 0.0
  %1100 = vmatprep.subr.mxu0 0.0
  %1101 = vmatpush1.msra.mxu0 0.0
  %1102 = vmatprep.subr.mxu0 0.0
  %1103 = vmatpush1.msra.mxu0 0.0
  %1104 = vmatprep.subr.mxu0 0.0
  %1105 = vmatpush1.msra.mxu0 0.0
  %1106 = vmatprep.subr.mxu0 0.0
  %1107 = vmatpush1.msra.mxu0 0.0
  %1108 = vmatprep.subr.mxu0 0.0
  %1109 = vmatpush1.msra.mxu0 0.0
  %1110 = vmatprep.subr.mxu0 0.0
  %1111 = vmatpush1.msra.mxu0 0.0
  %1112 = vmatprep.subr.mxu0 0.0
  %1113 = vmatpush1.msra.mxu0 0.0
  %1114 = vmatprep.subr.mxu0 0.0
  %1115 = vmatpush1.msra.mxu0 0.0
  %1116 = vmatprep.subr.mxu0 0.0
  %1117 = vmatpush1.msra.mxu0 0.0
  %1118 = vmatprep.subr.mxu0 0.0
  %1119 = vmatpush1.msra.mxu0 0.0
  %1120 = vmatprep.subr.mxu0 0.0
  %1121 = vmatpush1.msra.mxu0 0.0
  %1122 = vmatprep.subr.mxu0 0.0
  %1123 = vmatpush1.msra.mxu0 0.0
  %1124 = vmatprep.subr.mxu0 0.0
  %1125 = vmatpush1.msra.mxu0 0.0
  %1126 = vmatprep.subr.mxu0 0.0
  %1127 = vmatpush1.msra.mxu0 0.0
  %1128 = vmatprep.subr.mxu0 0.0
  %1129 = vmatpush1.msra.mxu0 0.0
  %1130 = vmatprep.subr.mxu0 0.0
  %1131 = vmatpush1.msra.mxu0 0.0
  %1132 = vmatprep.mubr.f32.mxu0 0.0
  %v1133 = vand.u32 %v70, 4294901760
  %1134 = vmatmul.mubr.f32.gmra.mrb[0].mxu0 %v1133
  %v1135 = vpop.f32.mrb[0].mxu0
  %v1136 = vadd.f32 %v977, %v1135
  %v1137 = vpop.f32.mrb[0].mxu0
  %v1138 = vadd.f32 %v979, %v1137
  %1139 = vmatprep.mubr.f32.mxu0 0.0
  %v1140 = vand.u32 %v72, 4294901760
  %1141 = vmatmul.mubr.f32.gmra.mrb[0].mxu0 %v1140
  %v1142 = vpop.f32.mrb[0].mxu0
  %v1143 = vadd.f32 %v988, %v1142
  %v1144 = vpop.f32.mrb[0].mxu0
  %v1145 = vadd.f32 %v990, %v1144
  %1146 = vmatprep.mubr.f32.mxu0 0.0
  %v1147 = vand.u32 %v74, 4294901760
  %1148 = vmatmul.mubr.f32.gmra.mrb[0].mxu0 %v1147
  %v1149 = vpop.f32.mrb[0].mxu0
  %v1150 = vadd.f32 %v999, %v1149
  %v1151 = vpop.f32.mrb[0].mxu0
  %v1152 = vadd.f32 %v1001, %v1151
  %1153 = vmatprep.mubr.f32.mxu0 0.0
  %v1154 = vand.u32 %v76, 4294901760
  %1155 = vmatmul.mubr.f32.gmra.mrb[0].mxu0 %v1154
  %v1156 = vpop.f32.mrb[0].mxu0
  %v1157 = vadd.f32 %v1010, %v1156
  %v1158 = vpop.f32.mrb[0].mxu0
  %v1159 = vadd.f32 %v1012, %v1158
  %1160 = vmatprep.mubr.f32.mxu0 0.0
  %v1161 = vand.u32 %v78, 4294901760
  %1162 = vmatmul.mubr.f32.gmra.mrb[0].mxu0 %v1161
  %v1163 = vpop.f32.mrb[0].mxu0
  %v1164 = vadd.f32 %v1021, %v1163
  %v1165 = vpop.f32.mrb[0].mxu0
  %v1166 = vadd.f32 %v1023, %v1165
  %1167 = vmatprep.mubr.f32.mxu0 0.0
  %v1168 = vand.u32 %v80, 4294901760
  %1169 = vmatmul.mubr.f32.gmra.mrb[0].mxu0 %v1168
  %v1170 = vpop.f32.mrb[0].mxu0
  %v1171 = vadd.f32 %v1032, %v1170
  %v1172 = vpop.f32.mrb[0].mxu0
  %v1173 = vadd.f32 %v1034, %v1172
  %1174 = vmatprep.mubr.f32.mxu0 0.0
  %v1175 = vand.u32 %v82, 4294901760
  %1176 = vmatmul.mubr.f32.gmra.mrb[0].mxu0 %v1175
  %v1177 = vpop.f32.mrb[0].mxu0
  %v1178 = vadd.f32 %v1043, %v1177
  %v1179 = vpop.f32.mrb[0].mxu0
  %v1180 = vadd.f32 %v1045, %v1179
  %1181 = vmatprep.mubr.f32.mxu0 0.0
  %v1182 = vand.u32 %v84, 4294901760
  %1183 = vmatmul.mubr.f32.gmra.mrb[0].mxu0 %v1182
  %v1184 = vpop.f32.mrb[0].mxu0
  %v1185 = vadd.f32 %v1054, %v1184
  %v1186 = vpop.f32.mrb[0].mxu0
  %v1187 = vadd.f32 %v1056, %v1186
  %1188 = vdwg.mxu0
  %v1189 = vand.u32 %v93, 4294901760
  %v1190 = vsub.f32 %v93, %v1189
  %1191 = vmatprep.subr.mxu0 %v1190
  %v1192 = vand.u32 %v91, 4294901760
  %v1193 = vsub.f32 %v91, %v1192
  %1194 = vmatpush1.msra.mxu0 %v1193
  %1195 = vmatprep.subr.mxu0 0.0
  %1196 = vmatpush1.msra.mxu0 0.0
  %1197 = vmatprep.subr.mxu0 0.0
  %1198 = vmatpush1.msra.mxu0 0.0
  %1199 = vmatprep.subr.mxu0 0.0
  %1200 = vmatpush1.msra.mxu0 0.0
  %1201 = vmatprep.subr.mxu0 0.0
  %1202 = vmatpush1.msra.mxu0 0.0
  %1203 = vmatprep.subr.mxu0 0.0
  %1204 = vmatpush1.msra.mxu0 0.0
  %1205 = vmatprep.subr.mxu0 0.0
  %1206 = vmatpush1.msra.mxu0 0.0
  %1207 = vmatprep.subr.mxu0 0.0
  %1208 = vmatpush1.msra.mxu0 0.0
  %1209 = vmatprep.subr.mxu0 0.0
  %1210 = vmatpush1.msra.mxu0 0.0
  %1211 = vmatprep.subr.mxu0 0.0
  %1212 = vmatpush1.msra.mxu0 0.0
  %1213 = vmatprep.subr.mxu0 0.0
  %1214 = vmatpush1.msra.mxu0 0.0
  %1215 = vmatprep.subr.mxu0 0.0
  %1216 = vmatpush1.msra.mxu0 0.0
  %1217 = vmatprep.subr.mxu0 0.0
  %1218 = vmatpush1.msra.mxu0 0.0
  %1219 = vmatprep.subr.mxu0 0.0
  %1220 = vmatpush1.msra.mxu0 0.0
  %1221 = vmatprep.subr.mxu0 0.0
  %1222 = vmatpush1.msra.mxu0 0.0
  %1223 = vmatprep.subr.mxu0 0.0
  %1224 = vmatpush1.msra.mxu0 0.0
  %1225 = vmatprep.subr.mxu0 0.0
  %1226 = vmatpush1.msra.mxu0 0.0
  %1227 = vmatprep.subr.mxu0 0.0
  %1228 = vmatpush1.msra.mxu0 0.0
  %1229 = vmatprep.subr.mxu0 0.0
  %1230 = vmatpush1.msra.mxu0 0.0
  %1231 = vmatprep.subr.mxu0 0.0
  %1232 = vmatpush1.msra.mxu0 0.0
  %1233 = vmatprep.subr.mxu0 0.0
  %1234 = vmatpush1.msra.mxu0 0.0
  %1235 = vmatprep.subr.mxu0 0.0
  %1236 = vmatpush1.msra.mxu0 0.0
  %1237 = vmatprep.subr.mxu0 0.0
  %1238 = vmatpush1.msra.mxu0 0.0
  %1239 = vmatprep.subr.mxu0 0.0
  %1240 = vmatpush1.msra.mxu0 0.0
  %1241 = vmatprep.subr.mxu0 0.0
  %1242 = vmatpush1.msra.mxu0 0.0
  %1243 = vmatprep.subr.mxu0 0.0
  %1244 = vmatpush1.msra.mxu0 0.0
  %1245 = vmatprep.subr.mxu0 0.0
  %1246 = vmatpush1.msra.mxu0 0.0
  %1247 = vmatprep.subr.mxu0 0.0
  %1248 = vmatpush1.msra.mxu0 0.0
  %1249 = vmatprep.subr.mxu0 0.0
  %1250 = vmatpush1.msra.mxu0 0.0
  %1251 = vmatprep.subr.mxu0 0.0
  %1252 = vmatpush1.msra.mxu0 0.0
  %1253 = vmatprep.subr.mxu0 0.0
  %1254 = vmatpush1.msra.mxu0 0.0
  %1255 = vmatprep.subr.mxu0 0.0
  %1256 = vmatpush1.msra.mxu0 0.0
  %1257 = vmatprep.mubr.f32.mxu0 0.0
  %v1258 = vand.u32 %v70, 4294901760
  %v1259 = vsub.f32 %v70, %v1258
  %1260 = vmatmul.mubr.f32.gmra.mrb[0].mxu0 %v1259
  %v1261 = vpop.f32.mrb[0].mxu0
  %v1262 = vadd.f32 %v1136, %v1261
  %v1263 = vpop.f32.mrb[0].mxu0
  %v1264 = vadd.f32 %v1138, %v1263
  %1265 = vmatprep.mubr.f32.mxu0 0.0
  %v1266 = vand.u32 %v72, 4294901760
  %v1267 = vsub.f32 %v72, %v1266
  %1268 = vmatmul.mubr.f32.gmra.mrb[0].mxu0 %v1267
  %v1269 = vpop.f32.mrb[0].mxu0
  %v1270 = vadd.f32 %v1143, %v1269
  %v1271 = vpop.f32.mrb[0].mxu0
  %v1272 = vadd.f32 %v1145, %v1271
  %1273 = vmatprep.mubr.f32.mxu0 0.0
  %v1274 = vand.u32 %v74, 4294901760
  %v1275 = vsub.f32 %v74, %v1274
  %1276 = vmatmul.mubr.f32.gmra.mrb[0].mxu0 %v1275
  %v1277 = vpop.f32.mrb[0].mxu0
  %v1278 = vadd.f32 %v1150, %v1277
  %v1279 = vpop.f32.mrb[0].mxu0
  %v1280 = vadd.f32 %v1152, %v1279
  %1281 = vmatprep.mubr.f32.mxu0 0.0
  %v1282 = vand.u32 %v76, 4294901760
  %v1283 = vsub.f32 %v76, %v1282
  %1284 = vmatmul.mubr.f32.gmra.mrb[0].mxu0 %v1283
  %v1285 = vpop.f32.mrb[0].mxu0
  %v1286 = vadd.f32 %v1157, %v1285
  %v1287 = vpop.f32.mrb[0].mxu0
  %v1288 = vadd.f32 %v1159, %v1287
  %1289 = vmatprep.mubr.f32.mxu0 0.0
  %v1290 = vand.u32 %v78, 4294901760
  %v1291 = vsub.f32 %v78, %v1290
  %1292 = vmatmul.mubr.f32.gmra.mrb[0].mxu0 %v1291
  %v1293 = vpop.f32.mrb[0].mxu0
  %v1294 = vadd.f32 %v1164, %v1293
  %v1295 = vpop.f32.mrb[0].mxu0
  %v1296 = vadd.f32 %v1166, %v1295
  %1297 = vmatprep.mubr.f32.mxu0 0.0
  %v1298 = vand.u32 %v80, 4294901760
  %v1299 = vsub.f32 %v80, %v1298
  %1300 = vmatmul.mubr.f32.gmra.mrb[0].mxu0 %v1299
  %v1301 = vpop.f32.mrb[0].mxu0
  %v1302 = vadd.f32 %v1171, %v1301
  %v1303 = vpop.f32.mrb[0].mxu0
  %v1304 = vadd.f32 %v1173, %v1303
  %1305 = vmatprep.mubr.f32.mxu0 0.0
  %v1306 = vand.u32 %v82, 4294901760
  %v1307 = vsub.f32 %v82, %v1306
  %1308 = vmatmul.mubr.f32.gmra.mrb[0].mxu0 %v1307
  %v1309 = vpop.f32.mrb[0].mxu0
  %v1310 = vadd.f32 %v1178, %v1309
  %v1311 = vpop.f32.mrb[0].mxu0
  %v1312 = vadd.f32 %v1180, %v1311
  %1313 = vmatprep.mubr.f32.mxu0 0.0
  %v1314 = vand.u32 %v84, 4294901760
  %v1315 = vsub.f32 %v84, %v1314
  %1316 = vmatmul.mubr.f32.gmra.mrb[0].mxu0 %v1315
  %v1317 = vpop.f32.mrb[0].mxu0
  %v1318 = vadd.f32 %v1185, %v1317
  %v1319 = vpop.f32.mrb[0].mxu0
  %v1320 = vadd.f32 %v1187, %v1319
  %1321 = vdwg.mxu0
  %v1322 = vand.u32 %v93, 4294901760
  %1323 = vmatprep.subr.mxu0 %v1322
  %v1324 = vand.u32 %v91, 4294901760
  %1325 = vmatpush1.msra.mxu0 %v1324
  %1326 = vmatprep.subr.mxu0 0.0
  %1327 = vmatpush1.msra.mxu0 0.0
  %1328 = vmatprep.subr.mxu0 0.0
  %1329 = vmatpush1.msra.mxu0 0.0
  %1330 = vmatprep.subr.mxu0 0.0
  %1331 = vmatpush1.msra.mxu0 0.0
  %1332 = vmatprep.subr.mxu0 0.0
  %1333 = vmatpush1.msra.mxu0 0.0
  %1334 = vmatprep.subr.mxu0 0.0
  %1335 = vmatpush1.msra.mxu0 0.0
  %1336 = vmatprep.subr.mxu0 0.0
  %1337 = vmatpush1.msra.mxu0 0.0
  %1338 = vmatprep.subr.mxu0 0.0
  %1339 = vmatpush1.msra.mxu0 0.0
  %1340 = vmatprep.subr.mxu0 0.0
  %1341 = vmatpush1.msra.mxu0 0.0
  %1342 = vmatprep.subr.mxu0 0.0
  %1343 = vmatpush1.msra.mxu0 0.0
  %1344 = vmatprep.subr.mxu0 0.0
  %1345 = vmatpush1.msra.mxu0 0.0
  %1346 = vmatprep.subr.mxu0 0.0
  %1347 = vmatpush1.msra.mxu0 0.0
  %1348 = vmatprep.subr.mxu0 0.0
  %1349 = vmatpush1.msra.mxu0 0.0
  %1350 = vmatprep.subr.mxu0 0.0
  %1351 = vmatpush1.msra.mxu0 0.0
  %1352 = vmatprep.subr.mxu0 0.0
  %1353 = vmatpush1.msra.mxu0 0.0
  %1354 = vmatprep.subr.mxu0 0.0
  %1355 = vmatpush1.msra.mxu0 0.0
  %1356 = vmatprep.subr.mxu0 0.0
  %1357 = vmatpush1.msra.mxu0 0.0
  %1358 = vmatprep.subr.mxu0 0.0
  %1359 = vmatpush1.msra.mxu0 0.0
  %1360 = vmatprep.subr.mxu0 0.0
  %1361 = vmatpush1.msra.mxu0 0.0
  %1362 = vmatprep.subr.mxu0 0.0
  %1363 = vmatpush1.msra.mxu0 0.0
  %1364 = vmatprep.subr.mxu0 0.0
  %1365 = vmatpush1.msra.mxu0 0.0
  %1366 = vmatprep.subr.mxu0 0.0
  %1367 = vmatpush1.msra.mxu0 0.0
  %1368 = vmatprep.subr.mxu0 0.0
  %1369 = vmatpush1.msra.mxu0 0.0
  %1370 = vmatprep.subr.mxu0 0.0
  %1371 = vmatpush1.msra.mxu0 0.0
  %1372 = vmatprep.subr.mxu0 0.0
  %1373 = vmatpush1.msra.mxu0 0.0
  %1374 = vmatprep.subr.mxu0 0.0
  %1375 = vmatpush1.msra.mxu0 0.0
  %1376 = vmatprep.subr.mxu0 0.0
  %1377 = vmatpush1.msra.mxu0 0.0
  %1378 = vmatprep.subr.mxu0 0.0
  %1379 = vmatpush1.msra.mxu0 0.0
  %1380 = vmatprep.subr.mxu0 0.0
  %1381 = vmatpush1.msra.mxu0 0.0
  %1382 = vmatprep.subr.mxu0 0.0
  %1383 = vmatpush1.msra.mxu0 0.0
  %1384 = vmatprep.subr.mxu0 0.0
  %1385 = vmatpush1.msra.mxu0 0.0
  %1386 = vmatprep.subr.mxu0 0.0
  %1387 = vmatpush1.msra.mxu0 0.0
  %1388 = vmatprep.mubr.f32.mxu0 0.0
  %v1389 = vand.u32 %v70, 4294901760
  %v1390 = vsub.f32 %v70, %v1389
  %v1391 = vand.u32 %v1390, 4294901760
  %1392 = vmatmul.mubr.f32.gmra.mrb[0].mxu0 %v1391
  %v1393 = vpop.f32.mrb[0].mxu0
  %v1394 = vadd.f32 %v1262, %v1393
  %v1395 = vpop.f32.mrb[0].mxu0
  %v1396 = vadd.f32 %v1264, %v1395
  %1397 = vmatprep.mubr.f32.mxu0 0.0
  %v1398 = vand.u32 %v72, 4294901760
  %v1399 = vsub.f32 %v72, %v1398
  %v1400 = vand.u32 %v1399, 4294901760
  %1401 = vmatmul.mubr.f32.gmra.mrb[0].mxu0 %v1400
  %v1402 = vpop.f32.mrb[0].mxu0
  %v1403 = vadd.f32 %v1270, %v1402
  %v1404 = vpop.f32.mrb[0].mxu0
  %v1405 = vadd.f32 %v1272, %v1404
  %1406 = vmatprep.mubr.f32.mxu0 0.0
  %v1407 = vand.u32 %v74, 4294901760
  %v1408 = vsub.f32 %v74, %v1407
  %v1409 = vand.u32 %v1408, 4294901760
  %1410 = vmatmul.mubr.f32.gmra.mrb[0].mxu0 %v1409
  %v1411 = vpop.f32.mrb[0].mxu0
  %v1412 = vadd.f32 %v1278, %v1411
  %v1413 = vpop.f32.mrb[0].mxu0
  %v1414 = vadd.f32 %v1280, %v1413
  %1415 = vmatprep.mubr.f32.mxu0 0.0
  %v1416 = vand.u32 %v76, 4294901760
  %v1417 = vsub.f32 %v76, %v1416
  %v1418 = vand.u32 %v1417, 4294901760
  %1419 = vmatmul.mubr.f32.gmra.mrb[0].mxu0 %v1418
  %v1420 = vpop.f32.mrb[0].mxu0
  %v1421 = vadd.f32 %v1286, %v1420
  %v1422 = vpop.f32.mrb[0].mxu0
  %v1423 = vadd.f32 %v1288, %v1422
  %1424 = vmatprep.mubr.f32.mxu0 0.0
  %v1425 = vand.u32 %v78, 4294901760
  %v1426 = vsub.f32 %v78, %v1425
  %v1427 = vand.u32 %v1426, 4294901760
  %1428 = vmatmul.mubr.f32.gmra.mrb[0].mxu0 %v1427
  %v1429 = vpop.f32.mrb[0].mxu0
  %v1430 = vadd.f32 %v1294, %v1429
  %v1431 = vpop.f32.mrb[0].mxu0
  %v1432 = vadd.f32 %v1296, %v1431
  %1433 = vmatprep.mubr.f32.mxu0 0.0
  %v1434 = vand.u32 %v80, 4294901760
  %v1435 = vsub.f32 %v80, %v1434
  %v1436 = vand.u32 %v1435, 4294901760
  %1437 = vmatmul.mubr.f32.gmra.mrb[0].mxu0 %v1436
  %v1438 = vpop.f32.mrb[0].mxu0
  %v1439 = vadd.f32 %v1302, %v1438
  %v1440 = vpop.f32.mrb[0].mxu0
  %v1441 = vadd.f32 %v1304, %v1440
  %1442 = vmatprep.mubr.f32.mxu0 0.0
  %v1443 = vand.u32 %v82, 4294901760
  %v1444 = vsub.f32 %v82, %v1443
  %v1445 = vand.u32 %v1444, 4294901760
  %1446 = vmatmul.mubr.f32.gmra.mrb[0].mxu0 %v1445
  %v1447 = vpop.f32.mrb[0].mxu0
  %v1448 = vadd.f32 %v1310, %v1447
  %v1449 = vpop.f32.mrb[0].mxu0
  %v1450 = vadd.f32 %v1312, %v1449
  %1451 = vmatprep.mubr.f32.mxu0 0.0
  %v1452 = vand.u32 %v84, 4294901760
  %v1453 = vsub.f32 %v84, %v1452
  %v1454 = vand.u32 %v1453, 4294901760
  %1455 = vmatmul.mubr.f32.gmra.mrb[0].mxu0 %v1454
  %v1456 = vpop.f32.mrb[0].mxu0
  %v1457 = vadd.f32 %v1318, %v1456
  %v1458 = vpop.f32.mrb[0].mxu0
  %v1459 = vadd.f32 %v1320, %v1458
  %1460 = vdwg.mxu0
  %v1461 = vand.u32 %v93, 4294901760
  %v1462 = vsub.f32 %v93, %v1461
  %v1463 = vand.u32 %v1462, 4294901760
  %1464 = vmatprep.subr.mxu0 %v1463
  %v1465 = vand.u32 %v91, 4294901760
  %v1466 = vsub.f32 %v91, %v1465
  %v1467 = vand.u32 %v1466, 4294901760
  %1468 = vmatpush1.msra.mxu0 %v1467
  %1469 = vmatprep.subr.mxu0 0.0
  %1470 = vmatpush1.msra.mxu0 0.0
  %1471 = vmatprep.subr.mxu0 0.0
  %1472 = vmatpush1.msra.mxu0 0.0
  %1473 = vmatprep.subr.mxu0 0.0
  %1474 = vmatpush1.msra.mxu0 0.0
  %1475 = vmatprep.subr.mxu0 0.0
  %1476 = vmatpush1.msra.mxu0 0.0
  %1477 = vmatprep.subr.mxu0 0.0
  %1478 = vmatpush1.msra.mxu0 0.0
  %1479 = vmatprep.subr.mxu0 0.0
  %1480 = vmatpush1.msra.mxu0 0.0
  %1481 = vmatprep.subr.mxu0 0.0
  %1482 = vmatpush1.msra.mxu0 0.0
  %1483 = vmatprep.subr.mxu0 0.0
  %1484 = vmatpush1.msra.mxu0 0.0
  %1485 = vmatprep.subr.mxu0 0.0
  %1486 = vmatpush1.msra.mxu0 0.0
  %1487 = vmatprep.subr.mxu0 0.0
  %1488 = vmatpush1.msra.mxu0 0.0
  %1489 = vmatprep.subr.mxu0 0.0
  %1490 = vmatpush1.msra.mxu0 0.0
  %1491 = vmatprep.subr.mxu0 0.0
  %1492 = vmatpush1.msra.mxu0 0.0
  %1493 = vmatprep.subr.mxu0 0.0
  %1494 = vmatpush1.msra.mxu0 0.0
  %1495 = vmatprep.subr.mxu0 0.0
  %1496 = vmatpush1.msra.mxu0 0.0
  %1497 = vmatprep.subr.mxu0 0.0
  %1498 = vmatpush1.msra.mxu0 0.0
  %1499 = vmatprep.subr.mxu0 0.0
  %1500 = vmatpush1.msra.mxu0 0.0
  %1501 = vmatprep.subr.mxu0 0.0
  %1502 = vmatpush1.msra.mxu0 0.0
  %1503 = vmatprep.subr.mxu0 0.0
  %1504 = vmatpush1.msra.mxu0 0.0
  %1505 = vmatprep.subr.mxu0 0.0
  %1506 = vmatpush1.msra.mxu0 0.0
  %1507 = vmatprep.subr.mxu0 0.0
  %1508 = vmatpush1.msra.mxu0 0.0
  %1509 = vmatprep.subr.mxu0 0.0
  %1510 = vmatpush1.msra.mxu0 0.0
  %1511 = vmatprep.subr.mxu0 0.0
  %1512 = vmatpush1.msra.mxu0 0.0
  %1513 = vmatprep.subr.mxu0 0.0
  %1514 = vmatpush1.msra.mxu0 0.0
  %1515 = vmatprep.subr.mxu0 0.0
  %1516 = vmatpush1.msra.mxu0 0.0
  %1517 = vmatprep.subr.mxu0 0.0
  %1518 = vmatpush1.msra.mxu0 0.0
  %1519 = vmatprep.subr.mxu0 0.0
  %1520 = vmatpush1.msra.mxu0 0.0
  %1521 = vmatprep.subr.mxu0 0.0
  %1522 = vmatpush1.msra.mxu0 0.0
  %1523 = vmatprep.subr.mxu0 0.0
  %1524 = vmatpush1.msra.mxu0 0.0
  %1525 = vmatprep.subr.mxu0 0.0
  %1526 = vmatpush1.msra.mxu0 0.0
  %1527 = vmatprep.subr.mxu0 0.0
  %1528 = vmatpush1.msra.mxu0 0.0
  %1529 = vmatprep.subr.mxu0 0.0
  %1530 = vmatpush1.msra.mxu0 0.0
  %1531 = vmatprep.mubr.f32.mxu0 0.0
  %v1532 = vand.u32 %v70, 4294901760
  %1533 = vmatmul.mubr.f32.gmra.mrb[0].mxu0 %v1532
  %v1534 = vpop.f32.mrb[0].mxu0
  %v1535 = vadd.f32 %v1394, %v1534
  %v1536 = vpop.f32.mrb[0].mxu0
  %v1537 = vadd.f32 %v1396, %v1536
  %1538 = vmatprep.mubr.f32.mxu0 0.0
  %v1539 = vand.u32 %v72, 4294901760
  %1540 = vmatmul.mubr.f32.gmra.mrb[0].mxu0 %v1539
  %v1541 = vpop.f32.mrb[0].mxu0
  %v1542 = vadd.f32 %v1403, %v1541
  %v1543 = vpop.f32.mrb[0].mxu0
  %v1544 = vadd.f32 %v1405, %v1543
  %1545 = vmatprep.mubr.f32.mxu0 0.0
  %v1546 = vand.u32 %v74, 4294901760
  %1547 = vmatmul.mubr.f32.gmra.mrb[0].mxu0 %v1546
  %v1548 = vpop.f32.mrb[0].mxu0
  %v1549 = vadd.f32 %v1412, %v1548
  %v1550 = vpop.f32.mrb[0].mxu0
  %v1551 = vadd.f32 %v1414, %v1550
  %1552 = vmatprep.mubr.f32.mxu0 0.0
  %v1553 = vand.u32 %v76, 4294901760
  %1554 = vmatmul.mubr.f32.gmra.mrb[0].mxu0 %v1553
  %v1555 = vpop.f32.mrb[0].mxu0
  %v1556 = vadd.f32 %v1421, %v1555
  %v1557 = vpop.f32.mrb[0].mxu0
  %v1558 = vadd.f32 %v1423, %v1557
  %1559 = vmatprep.mubr.f32.mxu0 0.0
  %v1560 = vand.u32 %v78, 4294901760
  %1561 = vmatmul.mubr.f32.gmra.mrb[0].mxu0 %v1560
  %v1562 = vpop.f32.mrb[0].mxu0
  %v1563 = vadd.f32 %v1430, %v1562
  %v1564 = vpop.f32.mrb[0].mxu0
  %v1565 = vadd.f32 %v1432, %v1564
  %1566 = vmatprep.mubr.f32.mxu0 0.0
  %v1567 = vand.u32 %v80, 4294901760
  %1568 = vmatmul.mubr.f32.gmra.mrb[0].mxu0 %v1567
  %v1569 = vpop.f32.mrb[0].mxu0
  %v1570 = vadd.f32 %v1439, %v1569
  %v1571 = vpop.f32.mrb[0].mxu0
  %v1572 = vadd.f32 %v1441, %v1571
  %1573 = vmatprep.mubr.f32.mxu0 0.0
  %v1574 = vand.u32 %v82, 4294901760
  %1575 = vmatmul.mubr.f32.gmra.mrb[0].mxu0 %v1574
  %v1576 = vpop.f32.mrb[0].mxu0
  %v1577 = vadd.f32 %v1448, %v1576
  %v1578 = vpop.f32.mrb[0].mxu0
  %v1579 = vadd.f32 %v1450, %v1578
  %1580 = vmatprep.mubr.f32.mxu0 0.0
  %v1581 = vand.u32 %v84, 4294901760
  %1582 = vmatmul.mubr.f32.gmra.mrb[0].mxu0 %v1581
  %v1583 = vpop.f32.mrb[0].mxu0
  %v1584 = vadd.f32 %v1457, %v1583
  %v1585 = vpop.f32.mrb[0].mxu0
  %v1586 = vadd.f32 %v1459, %v1585
  %1587 = vdwg.mxu0
  %v1588 = vand.u32 %v93, 4294901760
  %1589 = vmatprep.subr.mxu0 %v1588
  %v1590 = vand.u32 %v91, 4294901760
  %1591 = vmatpush1.msra.mxu0 %v1590
  %1592 = vmatprep.subr.mxu0 0.0
  %1593 = vmatpush1.msra.mxu0 0.0
  %1594 = vmatprep.subr.mxu0 0.0
  %1595 = vmatpush1.msra.mxu0 0.0
  %1596 = vmatprep.subr.mxu0 0.0
  %1597 = vmatpush1.msra.mxu0 0.0
  %1598 = vmatprep.subr.mxu0 0.0
  %1599 = vmatpush1.msra.mxu0 0.0
  %1600 = vmatprep.subr.mxu0 0.0
  %1601 = vmatpush1.msra.mxu0 0.0
  %1602 = vmatprep.subr.mxu0 0.0
  %1603 = vmatpush1.msra.mxu0 0.0
  %1604 = vmatprep.subr.mxu0 0.0
  %1605 = vmatpush1.msra.mxu0 0.0
  %1606 = vmatprep.subr.mxu0 0.0
  %1607 = vmatpush1.msra.mxu0 0.0
  %1608 = vmatprep.subr.mxu0 0.0
  %1609 = vmatpush1.msra.mxu0 0.0
  %1610 = vmatprep.subr.mxu0 0.0
  %1611 = vmatpush1.msra.mxu0 0.0
  %1612 = vmatprep.subr.mxu0 0.0
  %1613 = vmatpush1.msra.mxu0 0.0
  %1614 = vmatprep.subr.mxu0 0.0
  %1615 = vmatpush1.msra.mxu0 0.0
  %1616 = vmatprep.subr.mxu0 0.0
  %1617 = vmatpush1.msra.mxu0 0.0
  %1618 = vmatprep.subr.mxu0 0.0
  %1619 = vmatpush1.msra.mxu0 0.0
  %1620 = vmatprep.subr.mxu0 0.0
  %1621 = vmatpush1.msra.mxu0 0.0
  %1622 = vmatprep.subr.mxu0 0.0
  %1623 = vmatpush1.msra.mxu0 0.0
  %1624 = vmatprep.subr.mxu0 0.0
  %1625 = vmatpush1.msra.mxu0 0.0
  %1626 = vmatprep.subr.mxu0 0.0
  %1627 = vmatpush1.msra.mxu0 0.0
  %1628 = vmatprep.subr.mxu0 0.0
  %1629 = vmatpush1.msra.mxu0 0.0
  %1630 = vmatprep.subr.mxu0 0.0
  %1631 = vmatpush1.msra.mxu0 0.0
  %1632 = vmatprep.subr.mxu0 0.0
  %1633 = vmatpush1.msra.mxu0 0.0
  %1634 = vmatprep.subr.mxu0 0.0
  %1635 = vmatpush1.msra.mxu0 0.0
  %1636 = vmatprep.subr.mxu0 0.0
  %1637 = vmatpush1.msra.mxu0 0.0
  %1638 = vmatprep.subr.mxu0 0.0
  %1639 = vmatpush1.msra.mxu0 0.0
  %1640 = vmatprep.subr.mxu0 0.0
  %1641 = vmatpush1.msra.mxu0 0.0
  %1642 = vmatprep.subr.mxu0 0.0
  %1643 = vmatpush1.msra.mxu0 0.0
  %1644 = vmatprep.subr.mxu0 0.0
  %1645 = vmatpush1.msra.mxu0 0.0
  %1646 = vmatprep.subr.mxu0 0.0
  %1647 = vmatpush1.msra.mxu0 0.0
  %1648 = vmatprep.subr.mxu0 0.0
  %1649 = vmatpush1.msra.mxu0 0.0
  %1650 = vmatprep.subr.mxu0 0.0
  %1651 = vmatpush1.msra.mxu0 0.0
  %1652 = vmatprep.subr.mxu0 0.0
  %1653 = vmatpush1.msra.mxu0 0.0
  %1654 = vmatprep.mubr.f32.mxu0 0.0
  %v1655 = vand.u32 %v70, 4294901760
  %1656 = vmatmul.mubr.f32.gmra.mrb[0].mxu0 %v1655
  %v1657 = vpop.f32.mrb[0].mxu0
  %v1658 = vadd.f32 %v1535, %v1657
  %v1659 = vpop.f32.mrb[0].mxu0
  %v1660 = vadd.f32 %v1537, %v1659
  %1661 = vmatprep.mubr.f32.mxu0 0.0
  %v1662 = vand.u32 %v72, 4294901760
  %1663 = vmatmul.mubr.f32.gmra.mrb[0].mxu0 %v1662
  %v1664 = vpop.f32.mrb[0].mxu0
  %v1665 = vadd.f32 %v1542, %v1664
  %v1666 = vpop.f32.mrb[0].mxu0
  %v1667 = vadd.f32 %v1544, %v1666
  %1668 = vmatprep.mubr.f32.mxu0 0.0
  %v1669 = vand.u32 %v74, 4294901760
  %1670 = vmatmul.mubr.f32.gmra.mrb[0].mxu0 %v1669
  %v1671 = vpop.f32.mrb[0].mxu0
  %v1672 = vadd.f32 %v1549, %v1671
  %v1673 = vpop.f32.mrb[0].mxu0
  %v1674 = vadd.f32 %v1551, %v1673
  %1675 = vmatprep.mubr.f32.mxu0 0.0
  %v1676 = vand.u32 %v76, 4294901760
  %1677 = vmatmul.mubr.f32.gmra.mrb[0].mxu0 %v1676
  %v1678 = vpop.f32.mrb[0].mxu0
  %v1679 = vadd.f32 %v1556, %v1678
  %v1680 = vpop.f32.mrb[0].mxu0
  %v1681 = vadd.f32 %v1558, %v1680
  %1682 = vmatprep.mubr.f32.mxu0 0.0
  %v1683 = vand.u32 %v78, 4294901760
  %1684 = vmatmul.mubr.f32.gmra.mrb[0].mxu0 %v1683
  %v1685 = vpop.f32.mrb[0].mxu0
  %v1686 = vadd.f32 %v1563, %v1685
  %v1687 = vpop.f32.mrb[0].mxu0
  %v1688 = vadd.f32 %v1565, %v1687
  %1689 = vmatprep.mubr.f32.mxu0 0.0
  %v1690 = vand.u32 %v80, 4294901760
  %1691 = vmatmul.mubr.f32.gmra.mrb[0].mxu0 %v1690
  %v1692 = vpop.f32.mrb[0].mxu0
  %v1693 = vadd.f32 %v1570, %v1692
  %v1694 = vpop.f32.mrb[0].mxu0
  %v1695 = vadd.f32 %v1572, %v1694
  %1696 = vmatprep.mubr.f32.mxu0 0.0
  %v1697 = vand.u32 %v82, 4294901760
  %1698 = vmatmul.mubr.f32.gmra.mrb[0].mxu0 %v1697
  %v1699 = vpop.f32.mrb[0].mxu0
  %v1700 = vadd.f32 %v1577, %v1699
  %v1701 = vpop.f32.mrb[0].mxu0
  %v1702 = vadd.f32 %v1579, %v1701
  %1703 = vmatprep.mubr.f32.mxu0 0.0
  %v1704 = vand.u32 %v84, 4294901760
  %1705 = vmatmul.mubr.f32.gmra.mrb[0].mxu0 %v1704
  %v1706 = vpop.f32.mrb[0].mxu0
  %v1707 = vadd.f32 %v1584, %v1706
  %v1708 = vpop.f32.mrb[0].mxu0
  %v1709 = vadd.f32 %v1586, %v1708
  %1710 = vdwg.mxu0
  %v1711 = vmax.f32 %v850, 0.0
  %v1712 = vmax.f32 %v852, 0.0
  %v1713 = vmax.f32 %v1658, 0.0
  %v1714 = vmax.f32 %v1660, 0.0
  %v1715 = vmax.f32 %v857, 0.0
  %v1716 = vmax.f32 %v859, 0.0
  %v1717 = vmax.f32 %v1665, 0.0
  %v1718 = vmax.f32 %v1667, 0.0
  %v1719 = vmax.f32 %v864, 0.0
  %v1720 = vmax.f32 %v866, 0.0
  %v1721 = vmax.f32 %v1672, 0.0
  %v1722 = vmax.f32 %v1674, 0.0
  %v1723 = vmax.f32 %v871, 0.0
  %v1724 = vmax.f32 %v873, 0.0
  %v1725 = vmax.f32 %v1679, 0.0
  %v1726 = vmax.f32 %v1681, 0.0
  %v1727 = vmax.f32 %v878, 0.0
  %v1728 = vmax.f32 %v880, 0.0
  %v1729 = vmax.f32 %v1686, 0.0
  %v1730 = vmax.f32 %v1688, 0.0
  %v1731 = vmax.f32 %v885, 0.0
  %v1732 = vmax.f32 %v887, 0.0
  %v1733 = vmax.f32 %v1693, 0.0
  %v1734 = vmax.f32 %v1695, 0.0
  %v1735 = vmax.f32 %v892, 0.0
  %v1736 = vmax.f32 %v894, 0.0
  %v1737 = vmax.f32 %v1700, 0.0
  %v1738 = vmax.f32 %v1702, 0.0
  %v1739 = vmax.f32 %v899, 0.0
  %v1740 = vmax.f32 %v901, 0.0
  %v1741 = vmax.f32 %v1707, 0.0
  %v1742 = vmax.f32 %v1709, 0.0
  %1744 = vset.pattern.permute.xlu0 64
  %1745 = vperm.xlu0 %1744, %v24
  %v1746 = vpop.permute.xlu0 %1745
  %vm1748 = vcmask 523264
  %v1749 = vsel %vm1748, %v24, 0
  %v1751 = vand.u32 %v1712, 4294901760
  %1752 = vmatprep.subr.mxu0 %v1751
  %v1753 = vand.u32 %v1711, 4294901760
  %1754 = vmatpush1.msra.mxu0 %v1753
  %v1755 = vand.u32 %v1716, 4294901760
  %1756 = vmatprep.subr.mxu0 %v1755
  %v1757 = vand.u32 %v1715, 4294901760
  %1758 = vmatpush1.msra.mxu0 %v1757
  %v1759 = vand.u32 %v1720, 4294901760
  %1760 = vmatprep.subr.mxu0 %v1759
  %v1761 = vand.u32 %v1719, 4294901760
  %1762 = vmatpush1.msra.mxu0 %v1761
  %v1763 = vand.u32 %v1724, 4294901760
  %1764 = vmatprep.subr.mxu0 %v1763
  %v1765 = vand.u32 %v1723, 4294901760
  %1766 = vmatpush1.msra.mxu0 %v1765
  %v1767 = vand.u32 %v1728, 4294901760
  %1768 = vmatprep.subr.mxu0 %v1767
  %v1769 = vand.u32 %v1727, 4294901760
  %1770 = vmatpush1.msra.mxu0 %v1769
  %v1771 = vand.u32 %v1732, 4294901760
  %1772 = vmatprep.subr.mxu0 %v1771
  %v1773 = vand.u32 %v1731, 4294901760
  %1774 = vmatpush1.msra.mxu0 %v1773
  %v1775 = vand.u32 %v1736, 4294901760
  %1776 = vmatprep.subr.mxu0 %v1775
  %v1777 = vand.u32 %v1735, 4294901760
  %1778 = vmatpush1.msra.mxu0 %v1777
  %v1779 = vand.u32 %v1740, 4294901760
  %1780 = vmatprep.subr.mxu0 %v1779
  %v1781 = vand.u32 %v1739, 4294901760
  %1782 = vmatpush1.msra.mxu0 %v1781
  %1783 = vmatprep.subr.mxu0 0.0
  %1784 = vmatpush1.msra.mxu0 0.0
  %1785 = vmatprep.subr.mxu0 0.0
  %1786 = vmatpush1.msra.mxu0 0.0
  %1787 = vmatprep.subr.mxu0 0.0
  %1788 = vmatpush1.msra.mxu0 0.0
  %1789 = vmatprep.subr.mxu0 0.0
  %1790 = vmatpush1.msra.mxu0 0.0
  %1791 = vmatprep.subr.mxu0 0.0
  %1792 = vmatpush1.msra.mxu0 0.0
  %1793 = vmatprep.subr.mxu0 0.0
  %1794 = vmatpush1.msra.mxu0 0.0
  %1795 = vmatprep.subr.mxu0 0.0
  %1796 = vmatpush1.msra.mxu0 0.0
  %1797 = vmatprep.subr.mxu0 0.0
  %1798 = vmatpush1.msra.mxu0 0.0
  %1799 = vmatprep.subr.mxu0 0.0
  %1800 = vmatpush1.msra.mxu0 0.0
  %1801 = vmatprep.subr.mxu0 0.0
  %1802 = vmatpush1.msra.mxu0 0.0
  %1803 = vmatprep.subr.mxu0 0.0
  %1804 = vmatpush1.msra.mxu0 0.0
  %1805 = vmatprep.subr.mxu0 0.0
  %1806 = vmatpush1.msra.mxu0 0.0
  %1807 = vmatprep.subr.mxu0 0.0
  %1808 = vmatpush1.msra.mxu0 0.0
  %1809 = vmatprep.subr.mxu0 0.0
  %1810 = vmatpush1.msra.mxu0 0.0
  %1811 = vmatprep.subr.mxu0 0.0
  %1812 = vmatpush1.msra.mxu0 0.0
  %1813 = vmatprep.subr.mxu0 0.0
  %1814 = vmatpush1.msra.mxu0 0.0
  %1815 = vmatprep.subr.mxu0 0.0
  %1816 = vmatpush1.msra.mxu0 0.0
  %1817 = vmatprep.subr.mxu0 0.0
  %1818 = vmatpush1.msra.mxu0 0.0
  %1819 = vmatprep.subr.mxu0 0.0
  %1820 = vmatpush1.msra.mxu0 0.0
  %1821 = vmatprep.subr.mxu0 0.0
  %1822 = vmatpush1.msra.mxu0 0.0
  %1823 = vmatprep.subr.mxu0 0.0
  %1824 = vmatpush1.msra.mxu0 0.0
  %1825 = vmatprep.subr.mxu0 0.0
  %1826 = vmatpush1.msra.mxu0 0.0
  %1827 = vmatprep.subr.mxu0 0.0
  %1828 = vmatpush1.msra.mxu0 0.0
  %1829 = vmatprep.subr.mxu0 0.0
  %1830 = vmatpush1.msra.mxu0 0.0
  %1831 = vmatprep.mubr.f32.mxu0 0.0
  %v1832 = vand.u32 %v1749, 4294901760
  %v1833 = vsub.f32 %v1749, %v1832
  %v1834 = vand.u32 %v1833, 4294901760
  %v1835 = vsub.f32 %v1833, %v1834
  %v1836 = vand.u32 %v1835, 4294901760
  %1837 = vmatmul.mubr.f32.gmra.mrb[0].mxu0 %v1836
  %v1838 = vpop.f32.mrb[0].mxu0
  %v1839 = vadd.f32 %v1746, %v1838
  %v1840 = vpop.f32.mrb[0].mxu0
  %v1841 = vadd.f32 %v1746, %v1840
  %1842 = vdwg.mxu0
  %v1843 = vand.u32 %v1712, 4294901760
  %v1844 = vsub.f32 %v1712, %v1843
  %v1845 = vand.u32 %v1844, 4294901760
  %v1846 = vsub.f32 %v1844, %v1845
  %v1847 = vand.u32 %v1846, 4294901760
  %1848 = vmatprep.subr.mxu0 %v1847
  %v1849 = vand.u32 %v1711, 4294901760
  %v1850 = vsub.f32 %v1711, %v1849
  %v1851 = vand.u32 %v1850, 4294901760
  %v1852 = vsub.f32 %v1850, %v1851
  %v1853 = vand.u32 %v1852, 4294901760
  %1854 = vmatpush1.msra.mxu0 %v1853
  %v1855 = vand.u32 %v1716, 4294901760
  %v1856 = vsub.f32 %v1716, %v1855
  %v1857 = vand.u32 %v1856, 4294901760
  %v1858 = vsub.f32 %v1856, %v1857
  %v1859 = vand.u32 %v1858, 4294901760
  %1860 = vmatprep.subr.mxu0 %v1859
  %v1861 = vand.u32 %v1715, 4294901760
  %v1862 = vsub.f32 %v1715, %v1861
  %v1863 = vand.u32 %v1862, 4294901760
  %v1864 = vsub.f32 %v1862, %v1863
  %v1865 = vand.u32 %v1864, 4294901760
  %1866 = vmatpush1.msra.mxu0 %v1865
  %v1867 = vand.u32 %v1720, 4294901760
  %v1868 = vsub.f32 %v1720, %v1867
  %v1869 = vand.u32 %v1868, 4294901760
  %v1870 = vsub.f32 %v1868, %v1869
  %v1871 = vand.u32 %v1870, 4294901760
  %1872 = vmatprep.subr.mxu0 %v1871
  %v1873 = vand.u32 %v1719, 4294901760
  %v1874 = vsub.f32 %v1719, %v1873
  %v1875 = vand.u32 %v1874, 4294901760
  %v1876 = vsub.f32 %v1874, %v1875
  %v1877 = vand.u32 %v1876, 4294901760
  %1878 = vmatpush1.msra.mxu0 %v1877
  %v1879 = vand.u32 %v1724, 4294901760
  %v1880 = vsub.f32 %v1724, %v1879
  %v1881 = vand.u32 %v1880, 4294901760
  %v1882 = vsub.f32 %v1880, %v1881
  %v1883 = vand.u32 %v1882, 4294901760
  %1884 = vmatprep.subr.mxu0 %v1883
  %v1885 = vand.u32 %v1723, 4294901760
  %v1886 = vsub.f32 %v1723, %v1885
  %v1887 = vand.u32 %v1886, 4294901760
  %v1888 = vsub.f32 %v1886, %v1887
  %v1889 = vand.u32 %v1888, 4294901760
  %1890 = vmatpush1.msra.mxu0 %v1889
  %v1891 = vand.u32 %v1728, 4294901760
  %v1892 = vsub.f32 %v1728, %v1891
  %v1893 = vand.u32 %v1892, 4294901760
  %v1894 = vsub.f32 %v1892, %v1893
  %v1895 = vand.u32 %v1894, 4294901760
  %1896 = vmatprep.subr.mxu0 %v1895
  %v1897 = vand.u32 %v1727, 4294901760
  %v1898 = vsub.f32 %v1727, %v1897
  %v1899 = vand.u32 %v1898, 4294901760
  %v1900 = vsub.f32 %v1898, %v1899
  %v1901 = vand.u32 %v1900, 4294901760
  %1902 = vmatpush1.msra.mxu0 %v1901
  %v1903 = vand.u32 %v1732, 4294901760
  %v1904 = vsub.f32 %v1732, %v1903
  %v1905 = vand.u32 %v1904, 4294901760
  %v1906 = vsub.f32 %v1904, %v1905
  %v1907 = vand.u32 %v1906, 4294901760
  %1908 = vmatprep.subr.mxu0 %v1907
  %v1909 = vand.u32 %v1731, 4294901760
  %v1910 = vsub.f32 %v1731, %v1909
  %v1911 = vand.u32 %v1910, 4294901760
  %v1912 = vsub.f32 %v1910, %v1911
  %v1913 = vand.u32 %v1912, 4294901760
  %1914 = vmatpush1.msra.mxu0 %v1913
  %v1915 = vand.u32 %v1736, 4294901760
  %v1916 = vsub.f32 %v1736, %v1915
  %v1917 = vand.u32 %v1916, 4294901760
  %v1918 = vsub.f32 %v1916, %v1917
  %v1919 = vand.u32 %v1918, 4294901760
  %1920 = vmatprep.subr.mxu0 %v1919
  %v1921 = vand.u32 %v1735, 4294901760
  %v1922 = vsub.f32 %v1735, %v1921
  %v1923 = vand.u32 %v1922, 4294901760
  %v1924 = vsub.f32 %v1922, %v1923
  %v1925 = vand.u32 %v1924, 4294901760
  %1926 = vmatpush1.msra.mxu0 %v1925
  %v1927 = vand.u32 %v1740, 4294901760
  %v1928 = vsub.f32 %v1740, %v1927
  %v1929 = vand.u32 %v1928, 4294901760
  %v1930 = vsub.f32 %v1928, %v1929
  %v1931 = vand.u32 %v1930, 4294901760
  %1932 = vmatprep.subr.mxu0 %v1931
  %v1933 = vand.u32 %v1739, 4294901760
  %v1934 = vsub.f32 %v1739, %v1933
  %v1935 = vand.u32 %v1934, 4294901760
  %v1936 = vsub.f32 %v1934, %v1935
  %v1937 = vand.u32 %v1936, 4294901760
  %1938 = vmatpush1.msra.mxu0 %v1937
  %1939 = vmatprep.subr.mxu0 0.0
  %1940 = vmatpush1.msra.mxu0 0.0
  %1941 = vmatprep.subr.mxu0 0.0
  %1942 = vmatpush1.msra.mxu0 0.0
  %1943 = vmatprep.subr.mxu0 0.0
  %1944 = vmatpush1.msra.mxu0 0.0
  %1945 = vmatprep.subr.mxu0 0.0
  %1946 = vmatpush1.msra.mxu0 0.0
  %1947 = vmatprep.subr.mxu0 0.0
  %1948 = vmatpush1.msra.mxu0 0.0
  %1949 = vmatprep.subr.mxu0 0.0
  %1950 = vmatpush1.msra.mxu0 0.0
  %1951 = vmatprep.subr.mxu0 0.0
  %1952 = vmatpush1.msra.mxu0 0.0
  %1953 = vmatprep.subr.mxu0 0.0
  %1954 = vmatpush1.msra.mxu0 0.0
  %1955 = vmatprep.subr.mxu0 0.0
  %1956 = vmatpush1.msra.mxu0 0.0
  %1957 = vmatprep.subr.mxu0 0.0
  %1958 = vmatpush1.msra.mxu0 0.0
  %1959 = vmatprep.subr.mxu0 0.0
  %1960 = vmatpush1.msra.mxu0 0.0
  %1961 = vmatprep.subr.mxu0 0.0
  %1962 = vmatpush1.msra.mxu0 0.0
  %1963 = vmatprep.subr.mxu0 0.0
  %1964 = vmatpush1.msra.mxu0 0.0
  %1965 = vmatprep.subr.mxu0 0.0
  %1966 = vmatpush1.msra.mxu0 0.0
  %1967 = vmatprep.subr.mxu0 0.0
  %1968 = vmatpush1.msra.mxu0 0.0
  %1969 = vmatprep.subr.mxu0 0.0
  %1970 = vmatpush1.msra.mxu0 0.0
  %1971 = vmatprep.subr.mxu0 0.0
  %1972 = vmatpush1.msra.mxu0 0.0
  %1973 = vmatprep.subr.mxu0 0.0
  %1974 = vmatpush1.msra.mxu0 0.0
  %1975 = vmatprep.subr.mxu0 0.0
  %1976 = vmatpush1.msra.mxu0 0.0
  %1977 = vmatprep.subr.mxu0 0.0
  %1978 = vmatpush1.msra.mxu0 0.0
  %1979 = vmatprep.subr.mxu0 0.0
  %1980 = vmatpush1.msra.mxu0 0.0
  %1981 = vmatprep.subr.mxu0 0.0
  %1982 = vmatpush1.msra.mxu0 0.0
  %1983 = vmatprep.subr.mxu0 0.0
  %1984 = vmatpush1.msra.mxu0 0.0
  %1985 = vmatprep.subr.mxu0 0.0
  %1986 = vmatpush1.msra.mxu0 0.0
  %1987 = vmatprep.mubr.f32.mxu0 0.0
  %v1988 = vand.u32 %v1749, 4294901760
  %1989 = vmatmul.mubr.f32.gmra.mrb[0].mxu0 %v1988
  %v1990 = vpop.f32.mrb[0].mxu0
  %v1991 = vadd.f32 %v1839, %v1990
  %v1992 = vpop.f32.mrb[0].mxu0
  %v1993 = vadd.f32 %v1841, %v1992
  %1994 = vdwg.mxu0
  %v1995 = vand.u32 %v1712, 4294901760
  %v1996 = vsub.f32 %v1712, %v1995
  %1997 = vmatprep.subr.mxu0 %v1996
  %v1998 = vand.u32 %v1711, 4294901760
  %v1999 = vsub.f32 %v1711, %v1998
  %2000 = vmatpush1.msra.mxu0 %v1999
  %v2001 = vand.u32 %v1716, 4294901760
  %v2002 = vsub.f32 %v1716, %v2001
  %2003 = vmatprep.subr.mxu0 %v2002
  %v2004 = vand.u32 %v1715, 4294901760
  %v2005 = vsub.f32 %v1715, %v2004
  %2006 = vmatpush1.msra.mxu0 %v2005
  %v2007 = vand.u32 %v1720, 4294901760
  %v2008 = vsub.f32 %v1720, %v2007
  %2009 = vmatprep.subr.mxu0 %v2008
  %v2010 = vand.u32 %v1719, 4294901760
  %v2011 = vsub.f32 %v1719, %v2010
  %2012 = vmatpush1.msra.mxu0 %v2011
  %v2013 = vand.u32 %v1724, 4294901760
  %v2014 = vsub.f32 %v1724, %v2013
  %2015 = vmatprep.subr.mxu0 %v2014
  %v2016 = vand.u32 %v1723, 4294901760
  %v2017 = vsub.f32 %v1723, %v2016
  %2018 = vmatpush1.msra.mxu0 %v2017
  %v2019 = vand.u32 %v1728, 4294901760
  %v2020 = vsub.f32 %v1728, %v2019
  %2021 = vmatprep.subr.mxu0 %v2020
  %v2022 = vand.u32 %v1727, 4294901760
  %v2023 = vsub.f32 %v1727, %v2022
  %2024 = vmatpush1.msra.mxu0 %v2023
  %v2025 = vand.u32 %v1732, 4294901760
  %v2026 = vsub.f32 %v1732, %v2025
  %2027 = vmatprep.subr.mxu0 %v2026
  %v2028 = vand.u32 %v1731, 4294901760
  %v2029 = vsub.f32 %v1731, %v2028
  %2030 = vmatpush1.msra.mxu0 %v2029
  %v2031 = vand.u32 %v1736, 4294901760
  %v2032 = vsub.f32 %v1736, %v2031
  %2033 = vmatprep.subr.mxu0 %v2032
  %v2034 = vand.u32 %v1735, 4294901760
  %v2035 = vsub.f32 %v1735, %v2034
  %2036 = vmatpush1.msra.mxu0 %v2035
  %v2037 = vand.u32 %v1740, 4294901760
  %v2038 = vsub.f32 %v1740, %v2037
  %2039 = vmatprep.subr.mxu0 %v2038
  %v2040 = vand.u32 %v1739, 4294901760
  %v2041 = vsub.f32 %v1739, %v2040
  %2042 = vmatpush1.msra.mxu0 %v2041
  %2043 = vmatprep.subr.mxu0 0.0
  %2044 = vmatpush1.msra.mxu0 0.0
  %2045 = vmatprep.subr.mxu0 0.0
  %2046 = vmatpush1.msra.mxu0 0.0
  %2047 = vmatprep.subr.mxu0 0.0
  %2048 = vmatpush1.msra.mxu0 0.0
  %2049 = vmatprep.subr.mxu0 0.0
  %2050 = vmatpush1.msra.mxu0 0.0
  %2051 = vmatprep.subr.mxu0 0.0
  %2052 = vmatpush1.msra.mxu0 0.0
  %2053 = vmatprep.subr.mxu0 0.0
  %2054 = vmatpush1.msra.mxu0 0.0
  %2055 = vmatprep.subr.mxu0 0.0
  %2056 = vmatpush1.msra.mxu0 0.0
  %2057 = vmatprep.subr.mxu0 0.0
  %2058 = vmatpush1.msra.mxu0 0.0
  %2059 = vmatprep.subr.mxu0 0.0
  %2060 = vmatpush1.msra.mxu0 0.0
  %2061 = vmatprep.subr.mxu0 0.0
  %2062 = vmatpush1.msra.mxu0 0.0
  %2063 = vmatprep.subr.mxu0 0.0
  %2064 = vmatpush1.msra.mxu0 0.0
  %2065 = vmatprep.subr.mxu0 0.0
  %2066 = vmatpush1.msra.mxu0 0.0
  %2067 = vmatprep.subr.mxu0 0.0
  %2068 = vmatpush1.msra.mxu0 0.0
  %2069 = vmatprep.subr.mxu0 0.0
  %2070 = vmatpush1.msra.mxu0 0.0
  %2071 = vmatprep.subr.mxu0 0.0
  %2072 = vmatpush1.msra.mxu0 0.0
  %2073 = vmatprep.subr.mxu0 0.0
  %2074 = vmatpush1.msra.mxu0 0.0
  %2075 = vmatprep.subr.mxu0 0.0
  %2076 = vmatpush1.msra.mxu0 0.0
  %2077 = vmatprep.subr.mxu0 0.0
  %2078 = vmatpush1.msra.mxu0 0.0
  %2079 = vmatprep.subr.mxu0 0.0
  %2080 = vmatpush1.msra.mxu0 0.0
  %2081 = vmatprep.subr.mxu0 0.0
  %2082 = vmatpush1.msra.mxu0 0.0
  %2083 = vmatprep.subr.mxu0 0.0
  %2084 = vmatpush1.msra.mxu0 0.0
  %2085 = vmatprep.subr.mxu0 0.0
  %2086 = vmatpush1.msra.mxu0 0.0
  %2087 = vmatprep.subr.mxu0 0.0
  %2088 = vmatpush1.msra.mxu0 0.0
  %2089 = vmatprep.subr.mxu0 0.0
  %2090 = vmatpush1.msra.mxu0 0.0
  %2091 = vmatprep.mubr.f32.mxu0 0.0
  %v2092 = vand.u32 %v1749, 4294901760
  %v2093 = vsub.f32 %v1749, %v2092
  %2094 = vmatmul.mubr.f32.gmra.mrb[0].mxu0 %v2093
  %v2095 = vpop.f32.mrb[0].mxu0
  %v2096 = vadd.f32 %v1991, %v2095
  %v2097 = vpop.f32.mrb[0].mxu0
  %v2098 = vadd.f32 %v1993, %v2097
  %2099 = vdwg.mxu0
  %v2100 = vand.u32 %v1712, 4294901760
  %2101 = vmatprep.subr.mxu0 %v2100
  %v2102 = vand.u32 %v1711, 4294901760
  %2103 = vmatpush1.msra.mxu0 %v2102
  %v2104 = vand.u32 %v1716, 4294901760
  %2105 = vmatprep.subr.mxu0 %v2104
  %v2106 = vand.u32 %v1715, 4294901760
  %2107 = vmatpush1.msra.mxu0 %v2106
  %v2108 = vand.u32 %v1720, 4294901760
  %2109 = vmatprep.subr.mxu0 %v2108
  %v2110 = vand.u32 %v1719, 4294901760
  %2111 = vmatpush1.msra.mxu0 %v2110
  %v2112 = vand.u32 %v1724, 4294901760
  %2113 = vmatprep.subr.mxu0 %v2112
  %v2114 = vand.u32 %v1723, 4294901760
  %2115 = vmatpush1.msra.mxu0 %v2114
  %v2116 = vand.u32 %v1728, 4294901760
  %2117 = vmatprep.subr.mxu0 %v2116
  %v2118 = vand.u32 %v1727, 4294901760
  %2119 = vmatpush1.msra.mxu0 %v2118
  %v2120 = vand.u32 %v1732, 4294901760
  %2121 = vmatprep.subr.mxu0 %v2120
  %v2122 = vand.u32 %v1731, 4294901760
  %2123 = vmatpush1.msra.mxu0 %v2122
  %v2124 = vand.u32 %v1736, 4294901760
  %2125 = vmatprep.subr.mxu0 %v2124
  %v2126 = vand.u32 %v1735, 4294901760
  %2127 = vmatpush1.msra.mxu0 %v2126
  %v2128 = vand.u32 %v1740, 4294901760
  %2129 = vmatprep.subr.mxu0 %v2128
  %v2130 = vand.u32 %v1739, 4294901760
  %2131 = vmatpush1.msra.mxu0 %v2130
  %2132 = vmatprep.subr.mxu0 0.0
  %2133 = vmatpush1.msra.mxu0 0.0
  %2134 = vmatprep.subr.mxu0 0.0
  %2135 = vmatpush1.msra.mxu0 0.0
  %2136 = vmatprep.subr.mxu0 0.0
  %2137 = vmatpush1.msra.mxu0 0.0
  %2138 = vmatprep.subr.mxu0 0.0
  %2139 = vmatpush1.msra.mxu0 0.0
  %2140 = vmatprep.subr.mxu0 0.0
  %2141 = vmatpush1.msra.mxu0 0.0
  %2142 = vmatprep.subr.mxu0 0.0
  %2143 = vmatpush1.msra.mxu0 0.0
  %2144 = vmatprep.subr.mxu0 0.0
  %2145 = vmatpush1.msra.mxu0 0.0
  %2146 = vmatprep.subr.mxu0 0.0
  %2147 = vmatpush1.msra.mxu0 0.0
  %2148 = vmatprep.subr.mxu0 0.0
  %2149 = vmatpush1.msra.mxu0 0.0
  %2150 = vmatprep.subr.mxu0 0.0
  %2151 = vmatpush1.msra.mxu0 0.0
  %2152 = vmatprep.subr.mxu0 0.0
  %2153 = vmatpush1.msra.mxu0 0.0
  %2154 = vmatprep.subr.mxu0 0.0
  %2155 = vmatpush1.msra.mxu0 0.0
  %2156 = vmatprep.subr.mxu0 0.0
  %2157 = vmatpush1.msra.mxu0 0.0
  %2158 = vmatprep.subr.mxu0 0.0
  %2159 = vmatpush1.msra.mxu0 0.0
  %2160 = vmatprep.subr.mxu0 0.0
  %2161 = vmatpush1.msra.mxu0 0.0
  %2162 = vmatprep.subr.mxu0 0.0
  %2163 = vmatpush1.msra.mxu0 0.0
  %2164 = vmatprep.subr.mxu0 0.0
  %2165 = vmatpush1.msra.mxu0 0.0
  %2166 = vmatprep.subr.mxu0 0.0
  %2167 = vmatpush1.msra.mxu0 0.0
  %2168 = vmatprep.subr.mxu0 0.0
  %2169 = vmatpush1.msra.mxu0 0.0
  %2170 = vmatprep.subr.mxu0 0.0
  %2171 = vmatpush1.msra.mxu0 0.0
  %2172 = vmatprep.subr.mxu0 0.0
  %2173 = vmatpush1.msra.mxu0 0.0
  %2174 = vmatprep.subr.mxu0 0.0
  %2175 = vmatpush1.msra.mxu0 0.0
  %2176 = vmatprep.subr.mxu0 0.0
  %2177 = vmatpush1.msra.mxu0 0.0
  %2178 = vmatprep.subr.mxu0 0.0
  %2179 = vmatpush1.msra.mxu0 0.0
  %2180 = vmatprep.mubr.f32.mxu0 0.0
  %v2181 = vand.u32 %v1749, 4294901760
  %v2182 = vsub.f32 %v1749, %v2181
  %v2183 = vand.u32 %v2182, 4294901760
  %2184 = vmatmul.mubr.f32.gmra.mrb[0].mxu0 %v2183
  %v2185 = vpop.f32.mrb[0].mxu0
  %v2186 = vadd.f32 %v2096, %v2185
  %v2187 = vpop.f32.mrb[0].mxu0
  %v2188 = vadd.f32 %v2098, %v2187
  %2189 = vdwg.mxu0
  %v2190 = vand.u32 %v1712, 4294901760
  %v2191 = vsub.f32 %v1712, %v2190
  %v2192 = vand.u32 %v2191, 4294901760
  %2193 = vmatprep.subr.mxu0 %v2192
  %v2194 = vand.u32 %v1711, 4294901760
  %v2195 = vsub.f32 %v1711, %v2194
  %v2196 = vand.u32 %v2195, 4294901760
  %2197 = vmatpush1.msra.mxu0 %v2196
  %v2198 = vand.u32 %v1716, 4294901760
  %v2199 = vsub.f32 %v1716, %v2198
  %v2200 = vand.u32 %v2199, 4294901760
  %2201 = vmatprep.subr.mxu0 %v2200
  %v2202 = vand.u32 %v1715, 4294901760
  %v2203 = vsub.f32 %v1715, %v2202
  %v2204 = vand.u32 %v2203, 4294901760
  %2205 = vmatpush1.msra.mxu0 %v2204
  %v2206 = vand.u32 %v1720, 4294901760
  %v2207 = vsub.f32 %v1720, %v2206
  %v2208 = vand.u32 %v2207, 4294901760
  %2209 = vmatprep.subr.mxu0 %v2208
  %v2210 = vand.u32 %v1719, 4294901760
  %v2211 = vsub.f32 %v1719, %v2210
  %v2212 = vand.u32 %v2211, 4294901760
  %2213 = vmatpush1.msra.mxu0 %v2212
  %v2214 = vand.u32 %v1724, 4294901760
  %v2215 = vsub.f32 %v1724, %v2214
  %v2216 = vand.u32 %v2215, 4294901760
  %2217 = vmatprep.subr.mxu0 %v2216
  %v2218 = vand.u32 %v1723, 4294901760
  %v2219 = vsub.f32 %v1723, %v2218
  %v2220 = vand.u32 %v2219, 4294901760
  %2221 = vmatpush1.msra.mxu0 %v2220
  %v2222 = vand.u32 %v1728, 4294901760
  %v2223 = vsub.f32 %v1728, %v2222
  %v2224 = vand.u32 %v2223, 4294901760
  %2225 = vmatprep.subr.mxu0 %v2224
  %v2226 = vand.u32 %v1727, 4294901760
  %v2227 = vsub.f32 %v1727, %v2226
  %v2228 = vand.u32 %v2227, 4294901760
  %2229 = vmatpush1.msra.mxu0 %v2228
  %v2230 = vand.u32 %v1732, 4294901760
  %v2231 = vsub.f32 %v1732, %v2230
  %v2232 = vand.u32 %v2231, 4294901760
  %2233 = vmatprep.subr.mxu0 %v2232
  %v2234 = vand.u32 %v1731, 4294901760
  %v2235 = vsub.f32 %v1731, %v2234
  %v2236 = vand.u32 %v2235, 4294901760
  %2237 = vmatpush1.msra.mxu0 %v2236
  %v2238 = vand.u32 %v1736, 4294901760
  %v2239 = vsub.f32 %v1736, %v2238
  %v2240 = vand.u32 %v2239, 4294901760
  %2241 = vmatprep.subr.mxu0 %v2240
  %v2242 = vand.u32 %v1735, 4294901760
  %v2243 = vsub.f32 %v1735, %v2242
  %v2244 = vand.u32 %v2243, 4294901760
  %2245 = vmatpush1.msra.mxu0 %v2244
  %v2246 = vand.u32 %v1740, 4294901760
  %v2247 = vsub.f32 %v1740, %v2246
  %v2248 = vand.u32 %v2247, 4294901760
  %2249 = vmatprep.subr.mxu0 %v2248
  %v2250 = vand.u32 %v1739, 4294901760
  %v2251 = vsub.f32 %v1739, %v2250
  %v2252 = vand.u32 %v2251, 4294901760
  %2253 = vmatpush1.msra.mxu0 %v2252
  %2254 = vmatprep.subr.mxu0 0.0
  %2255 = vmatpush1.msra.mxu0 0.0
  %2256 = vmatprep.subr.mxu0 0.0
  %2257 = vmatpush1.msra.mxu0 0.0
  %2258 = vmatprep.subr.mxu0 0.0
  %2259 = vmatpush1.msra.mxu0 0.0
  %2260 = vmatprep.subr.mxu0 0.0
  %2261 = vmatpush1.msra.mxu0 0.0
  %2262 = vmatprep.subr.mxu0 0.0
  %2263 = vmatpush1.msra.mxu0 0.0
  %2264 = vmatprep.subr.mxu0 0.0
  %2265 = vmatpush1.msra.mxu0 0.0
  %2266 = vmatprep.subr.mxu0 0.0
  %2267 = vmatpush1.msra.mxu0 0.0
  %2268 = vmatprep.subr.mxu0 0.0
  %2269 = vmatpush1.msra.mxu0 0.0
  %2270 = vmatprep.subr.mxu0 0.0
  %2271 = vmatpush1.msra.mxu0 0.0
  %2272 = vmatprep.subr.mxu0 0.0
  %2273 = vmatpush1.msra.mxu0 0.0
  %2274 = vmatprep.subr.mxu0 0.0
  %2275 = vmatpush1.msra.mxu0 0.0
  %2276 = vmatprep.subr.mxu0 0.0
  %2277 = vmatpush1.msra.mxu0 0.0
  %2278 = vmatprep.subr.mxu0 0.0
  %2279 = vmatpush1.msra.mxu0 0.0
  %2280 = vmatprep.subr.mxu0 0.0
  %2281 = vmatpush1.msra.mxu0 0.0
  %2282 = vmatprep.subr.mxu0 0.0
  %2283 = vmatpush1.msra.mxu0 0.0
  %2284 = vmatprep.subr.mxu0 0.0
  %2285 = vmatpush1.msra.mxu0 0.0
  %2286 = vmatprep.subr.mxu0 0.0
  %2287 = vmatpush1.msra.mxu0 0.0
  %2288 = vmatprep.subr.mxu0 0.0
  %2289 = vmatpush1.msra.mxu0 0.0
  %2290 = vmatprep.subr.mxu0 0.0
  %2291 = vmatpush1.msra.mxu0 0.0
  %2292 = vmatprep.subr.mxu0 0.0
  %2293 = vmatpush1.msra.mxu0 0.0
  %2294 = vmatprep.subr.mxu0 0.0
  %2295 = vmatpush1.msra.mxu0 0.0
  %2296 = vmatprep.subr.mxu0 0.0
  %2297 = vmatpush1.msra.mxu0 0.0
  %2298 = vmatprep.subr.mxu0 0.0
  %2299 = vmatpush1.msra.mxu0 0.0
  %2300 = vmatprep.subr.mxu0 0.0
  %2301 = vmatpush1.msra.mxu0 0.0
  %2302 = vmatprep.mubr.f32.mxu0 0.0
  %v2303 = vand.u32 %v1749, 4294901760
  %2304 = vmatmul.mubr.f32.gmra.mrb[0].mxu0 %v2303
  %v2305 = vpop.f32.mrb[0].mxu0
  %v2306 = vadd.f32 %v2186, %v2305
  %v2307 = vpop.f32.mrb[0].mxu0
  %v2308 = vadd.f32 %v2188, %v2307
  %2309 = vdwg.mxu0
  %v2310 = vand.u32 %v1712, 4294901760
  %2311 = vmatprep.subr.mxu0 %v2310
  %v2312 = vand.u32 %v1711, 4294901760
  %2313 = vmatpush1.msra.mxu0 %v2312
  %v2314 = vand.u32 %v1716, 4294901760
  %2315 = vmatprep.subr.mxu0 %v2314
  %v2316 = vand.u32 %v1715, 4294901760
  %2317 = vmatpush1.msra.mxu0 %v2316
  %v2318 = vand.u32 %v1720, 4294901760
  %2319 = vmatprep.subr.mxu0 %v2318
  %v2320 = vand.u32 %v1719, 4294901760
  %2321 = vmatpush1.msra.mxu0 %v2320
  %v2322 = vand.u32 %v1724, 4294901760
  %2323 = vmatprep.subr.mxu0 %v2322
  %v2324 = vand.u32 %v1723, 4294901760
  %2325 = vmatpush1.msra.mxu0 %v2324
  %v2326 = vand.u32 %v1728, 4294901760
  %2327 = vmatprep.subr.mxu0 %v2326
  %v2328 = vand.u32 %v1727, 4294901760
  %2329 = vmatpush1.msra.mxu0 %v2328
  %v2330 = vand.u32 %v1732, 4294901760
  %2331 = vmatprep.subr.mxu0 %v2330
  %v2332 = vand.u32 %v1731, 4294901760
  %2333 = vmatpush1.msra.mxu0 %v2332
  %v2334 = vand.u32 %v1736, 4294901760
  %2335 = vmatprep.subr.mxu0 %v2334
  %v2336 = vand.u32 %v1735, 4294901760
  %2337 = vmatpush1.msra.mxu0 %v2336
  %v2338 = vand.u32 %v1740, 4294901760
  %2339 = vmatprep.subr.mxu0 %v2338
  %v2340 = vand.u32 %v1739, 4294901760
  %2341 = vmatpush1.msra.mxu0 %v2340
  %2342 = vmatprep.subr.mxu0 0.0
  %2343 = vmatpush1.msra.mxu0 0.0
  %2344 = vmatprep.subr.mxu0 0.0
  %2345 = vmatpush1.msra.mxu0 0.0
  %2346 = vmatprep.subr.mxu0 0.0
  %2347 = vmatpush1.msra.mxu0 0.0
  %2348 = vmatprep.subr.mxu0 0.0
  %2349 = vmatpush1.msra.mxu0 0.0
  %2350 = vmatprep.subr.mxu0 0.0
  %2351 = vmatpush1.msra.mxu0 0.0
  %2352 = vmatprep.subr.mxu0 0.0
  %2353 = vmatpush1.msra.mxu0 0.0
  %2354 = vmatprep.subr.mxu0 0.0
  %2355 = vmatpush1.msra.mxu0 0.0
  %2356 = vmatprep.subr.mxu0 0.0
  %2357 = vmatpush1.msra.mxu0 0.0
  %2358 = vmatprep.subr.mxu0 0.0
  %2359 = vmatpush1.msra.mxu0 0.0
  %2360 = vmatprep.subr.mxu0 0.0
  %2361 = vmatpush1.msra.mxu0 0.0
  %2362 = vmatprep.subr.mxu0 0.0
  %2363 = vmatpush1.msra.mxu0 0.0
  %2364 = vmatprep.subr.mxu0 0.0
  %2365 = vmatpush1.msra.mxu0 0.0
  %2366 = vmatprep.subr.mxu0 0.0
  %2367 = vmatpush1.msra.mxu0 0.0
  %2368 = vmatprep.subr.mxu0 0.0
  %2369 = vmatpush1.msra.mxu0 0.0
  %2370 = vmatprep.subr.mxu0 0.0
  %2371 = vmatpush1.msra.mxu0 0.0
  %2372 = vmatprep.subr.mxu0 0.0
  %2373 = vmatpush1.msra.mxu0 0.0
  %2374 = vmatprep.subr.mxu0 0.0
  %2375 = vmatpush1.msra.mxu0 0.0
  %2376 = vmatprep.subr.mxu0 0.0
  %2377 = vmatpush1.msra.mxu0 0.0
  %2378 = vmatprep.subr.mxu0 0.0
  %2379 = vmatpush1.msra.mxu0 0.0
  %2380 = vmatprep.subr.mxu0 0.0
  %2381 = vmatpush1.msra.mxu0 0.0
  %2382 = vmatprep.subr.mxu0 0.0
  %2383 = vmatpush1.msra.mxu0 0.0
  %2384 = vmatprep.subr.mxu0 0.0
  %2385 = vmatpush1.msra.mxu0 0.0
  %2386 = vmatprep.subr.mxu0 0.0
  %2387 = vmatpush1.msra.mxu0 0.0
  %2388 = vmatprep.subr.mxu0 0.0
  %2389 = vmatpush1.msra.mxu0 0.0
  %2390 = vmatprep.mubr.f32.mxu0 0.0
  %v2391 = vand.u32 %v1749, 4294901760
  %2392 = vmatmul.mubr.f32.gmra.mrb[0].mxu0 %v2391
  %v2393 = vpop.f32.mrb[0].mxu0
  %v2394 = vadd.f32 %v2306, %v2393
  %v2395 = vpop.f32.mrb[0].mxu0
  %v2396 = vadd.f32 %v2308, %v2395
  %2397 = vdwg.mxu0
  %v2398 = vand.u32 %v1714, 4294901760
  %2399 = vmatprep.subr.mxu0 %v2398
  %v2400 = vand.u32 %v1713, 4294901760
  %2401 = vmatpush1.msra.mxu0 %v2400
  %v2402 = vand.u32 %v1718, 4294901760
  %2403 = vmatprep.subr.mxu0 %v2402
  %v2404 = vand.u32 %v1717, 4294901760
  %2405 = vmatpush1.msra.mxu0 %v2404
  %v2406 = vand.u32 %v1722, 4294901760
  %2407 = vmatprep.subr.mxu0 %v2406
  %v2408 = vand.u32 %v1721, 4294901760
  %2409 = vmatpush1.msra.mxu0 %v2408
  %v2410 = vand.u32 %v1726, 4294901760
  %2411 = vmatprep.subr.mxu0 %v2410
  %v2412 = vand.u32 %v1725, 4294901760
  %2413 = vmatpush1.msra.mxu0 %v2412
  %v2414 = vand.u32 %v1730, 4294901760
  %2415 = vmatprep.subr.mxu0 %v2414
  %v2416 = vand.u32 %v1729, 4294901760
  %2417 = vmatpush1.msra.mxu0 %v2416
  %v2418 = vand.u32 %v1734, 4294901760
  %2419 = vmatprep.subr.mxu0 %v2418
  %v2420 = vand.u32 %v1733, 4294901760
  %2421 = vmatpush1.msra.mxu0 %v2420
  %v2422 = vand.u32 %v1738, 4294901760
  %2423 = vmatprep.subr.mxu0 %v2422
  %v2424 = vand.u32 %v1737, 4294901760
  %2425 = vmatpush1.msra.mxu0 %v2424
  %v2426 = vand.u32 %v1742, 4294901760
  %2427 = vmatprep.subr.mxu0 %v2426
  %v2428 = vand.u32 %v1741, 4294901760
  %2429 = vmatpush1.msra.mxu0 %v2428
  %2430 = vmatprep.subr.mxu0 0.0
  %2431 = vmatpush1.msra.mxu0 0.0
  %2432 = vmatprep.subr.mxu0 0.0
  %2433 = vmatpush1.msra.mxu0 0.0
  %2434 = vmatprep.subr.mxu0 0.0
  %2435 = vmatpush1.msra.mxu0 0.0
  %2436 = vmatprep.subr.mxu0 0.0
  %2437 = vmatpush1.msra.mxu0 0.0
  %2438 = vmatprep.subr.mxu0 0.0
  %2439 = vmatpush1.msra.mxu0 0.0
  %2440 = vmatprep.subr.mxu0 0.0
  %2441 = vmatpush1.msra.mxu0 0.0
  %2442 = vmatprep.subr.mxu0 0.0
  %2443 = vmatpush1.msra.mxu0 0.0
  %2444 = vmatprep.subr.mxu0 0.0
  %2445 = vmatpush1.msra.mxu0 0.0
  %2446 = vmatprep.subr.mxu0 0.0
  %2447 = vmatpush1.msra.mxu0 0.0
  %2448 = vmatprep.subr.mxu0 0.0
  %2449 = vmatpush1.msra.mxu0 0.0
  %2450 = vmatprep.subr.mxu0 0.0
  %2451 = vmatpush1.msra.mxu0 0.0
  %2452 = vmatprep.subr.mxu0 0.0
  %2453 = vmatpush1.msra.mxu0 0.0
  %2454 = vmatprep.subr.mxu0 0.0
  %2455 = vmatpush1.msra.mxu0 0.0
  %2456 = vmatprep.subr.mxu0 0.0
  %2457 = vmatpush1.msra.mxu0 0.0
  %2458 = vmatprep.subr.mxu0 0.0
  %2459 = vmatpush1.msra.mxu0 0.0
  %2460 = vmatprep.subr.mxu0 0.0
  %2461 = vmatpush1.msra.mxu0 0.0
  %2462 = vmatprep.subr.mxu0 0.0
  %2463 = vmatpush1.msra.mxu0 0.0
  %2464 = vmatprep.subr.mxu0 0.0
  %2465 = vmatpush1.msra.mxu0 0.0
  %2466 = vmatprep.subr.mxu0 0.0
  %2467 = vmatpush1.msra.mxu0 0.0
  %2468 = vmatprep.subr.mxu0 0.0
  %2469 = vmatpush1.msra.mxu0 0.0
  %2470 = vmatprep.subr.mxu0 0.0
  %2471 = vmatpush1.msra.mxu0 0.0
  %2472 = vmatprep.subr.mxu0 0.0
  %2473 = vmatpush1.msra.mxu0 0.0
  %2474 = vmatprep.subr.mxu0 0.0
  %2475 = vmatpush1.msra.mxu0 0.0
  %2476 = vmatprep.subr.mxu0 0.0
  %2477 = vmatpush1.msra.mxu0 0.0
  %2478 = vmatprep.mubr.f32.mxu0 0.0
  %v2479 = vand.u32 %v1749, 4294901760
  %v2480 = vsub.f32 %v1749, %v2479
  %v2481 = vand.u32 %v2480, 4294901760
  %v2482 = vsub.f32 %v2480, %v2481
  %v2483 = vand.u32 %v2482, 4294901760
  %2484 = vmatmul.mubr.f32.gmra.mrb[0].mxu0 %v2483
  %v2485 = vpop.f32.mrb[0].mxu0
  %v2486 = vadd.f32 %v1746, %v2485
  %v2487 = vpop.f32.mrb[0].mxu0
  %v2488 = vadd.f32 %v1746, %v2487
  %2489 = vdwg.mxu0
  %v2490 = vand.u32 %v1714, 4294901760
  %v2491 = vsub.f32 %v1714, %v2490
  %v2492 = vand.u32 %v2491, 4294901760
  %v2493 = vsub.f32 %v2491, %v2492
  %v2494 = vand.u32 %v2493, 4294901760
  %2495 = vmatprep.subr.mxu0 %v2494
  %v2496 = vand.u32 %v1713, 4294901760
  %v2497 = vsub.f32 %v1713, %v2496
  %v2498 = vand.u32 %v2497, 4294901760
  %v2499 = vsub.f32 %v2497, %v2498
  %v2500 = vand.u32 %v2499, 4294901760
  %2501 = vmatpush1.msra.mxu0 %v2500
  %v2502 = vand.u32 %v1718, 4294901760
  %v2503 = vsub.f32 %v1718, %v2502
  %v2504 = vand.u32 %v2503, 4294901760
  %v2505 = vsub.f32 %v2503, %v2504
  %v2506 = vand.u32 %v2505, 4294901760
  %2507 = vmatprep.subr.mxu0 %v2506
  %v2508 = vand.u32 %v1717, 4294901760
  %v2509 = vsub.f32 %v1717, %v2508
  %v2510 = vand.u32 %v2509, 4294901760
  %v2511 = vsub.f32 %v2509, %v2510
  %v2512 = vand.u32 %v2511, 4294901760
  %2513 = vmatpush1.msra.mxu0 %v2512
  %v2514 = vand.u32 %v1722, 4294901760
  %v2515 = vsub.f32 %v1722, %v2514
  %v2516 = vand.u32 %v2515, 4294901760
  %v2517 = vsub.f32 %v2515, %v2516
  %v2518 = vand.u32 %v2517, 4294901760
  %2519 = vmatprep.subr.mxu0 %v2518
  %v2520 = vand.u32 %v1721, 4294901760
  %v2521 = vsub.f32 %v1721, %v2520
  %v2522 = vand.u32 %v2521, 4294901760
  %v2523 = vsub.f32 %v2521, %v2522
  %v2524 = vand.u32 %v2523, 4294901760
  %2525 = vmatpush1.msra.mxu0 %v2524
  %v2526 = vand.u32 %v1726, 4294901760
  %v2527 = vsub.f32 %v1726, %v2526
  %v2528 = vand.u32 %v2527, 4294901760
  %v2529 = vsub.f32 %v2527, %v2528
  %v2530 = vand.u32 %v2529, 4294901760
  %2531 = vmatprep.subr.mxu0 %v2530
  %v2532 = vand.u32 %v1725, 4294901760
  %v2533 = vsub.f32 %v1725, %v2532
  %v2534 = vand.u32 %v2533, 4294901760
  %v2535 = vsub.f32 %v2533, %v2534
  %v2536 = vand.u32 %v2535, 4294901760
  %2537 = vmatpush1.msra.mxu0 %v2536
  %v2538 = vand.u32 %v1730, 4294901760
  %v2539 = vsub.f32 %v1730, %v2538
  %v2540 = vand.u32 %v2539, 4294901760
  %v2541 = vsub.f32 %v2539, %v2540
  %v2542 = vand.u32 %v2541, 4294901760
  %2543 = vmatprep.subr.mxu0 %v2542
  %v2544 = vand.u32 %v1729, 4294901760
  %v2545 = vsub.f32 %v1729, %v2544
  %v2546 = vand.u32 %v2545, 4294901760
  %v2547 = vsub.f32 %v2545, %v2546
  %v2548 = vand.u32 %v2547, 4294901760
  %2549 = vmatpush1.msra.mxu0 %v2548
  %v2550 = vand.u32 %v1734, 4294901760
  %v2551 = vsub.f32 %v1734, %v2550
  %v2552 = vand.u32 %v2551, 4294901760
  %v2553 = vsub.f32 %v2551, %v2552
  %v2554 = vand.u32 %v2553, 4294901760
  %2555 = vmatprep.subr.mxu0 %v2554
  %v2556 = vand.u32 %v1733, 4294901760
  %v2557 = vsub.f32 %v1733, %v2556
  %v2558 = vand.u32 %v2557, 4294901760
  %v2559 = vsub.f32 %v2557, %v2558
  %v2560 = vand.u32 %v2559, 4294901760
  %2561 = vmatpush1.msra.mxu0 %v2560
  %v2562 = vand.u32 %v1738, 4294901760
  %v2563 = vsub.f32 %v1738, %v2562
  %v2564 = vand.u32 %v2563, 4294901760
  %v2565 = vsub.f32 %v2563, %v2564
  %v2566 = vand.u32 %v2565, 4294901760
  %2567 = vmatprep.subr.mxu0 %v2566
  %v2568 = vand.u32 %v1737, 4294901760
  %v2569 = vsub.f32 %v1737, %v2568
  %v2570 = vand.u32 %v2569, 4294901760
  %v2571 = vsub.f32 %v2569, %v2570
  %v2572 = vand.u32 %v2571, 4294901760
  %2573 = vmatpush1.msra.mxu0 %v2572
  %v2574 = vand.u32 %v1742, 4294901760
  %v2575 = vsub.f32 %v1742, %v2574
  %v2576 = vand.u32 %v2575, 4294901760
  %v2577 = vsub.f32 %v2575, %v2576
  %v2578 = vand.u32 %v2577, 4294901760
  %2579 = vmatprep.subr.mxu0 %v2578
  %v2580 = vand.u32 %v1741, 4294901760
  %v2581 = vsub.f32 %v1741, %v2580
  %v2582 = vand.u32 %v2581, 4294901760
  %v2583 = vsub.f32 %v2581, %v2582
  %v2584 = vand.u32 %v2583, 4294901760
  %2585 = vmatpush1.msra.mxu0 %v2584
  %2586 = vmatprep.subr.mxu0 0.0
  %2587 = vmatpush1.msra.mxu0 0.0
  %2588 = vmatprep.subr.mxu0 0.0
  %2589 = vmatpush1.msra.mxu0 0.0
  %2590 = vmatprep.subr.mxu0 0.0
  %2591 = vmatpush1.msra.mxu0 0.0
  %2592 = vmatprep.subr.mxu0 0.0
  %2593 = vmatpush1.msra.mxu0 0.0
  %2594 = vmatprep.subr.mxu0 0.0
  %2595 = vmatpush1.msra.mxu0 0.0
  %2596 = vmatprep.subr.mxu0 0.0
  %2597 = vmatpush1.msra.mxu0 0.0
  %2598 = vmatprep.subr.mxu0 0.0
  %2599 = vmatpush1.msra.mxu0 0.0
  %2600 = vmatprep.subr.mxu0 0.0
  %2601 = vmatpush1.msra.mxu0 0.0
  %2602 = vmatprep.subr.mxu0 0.0
  %2603 = vmatpush1.msra.mxu0 0.0
  %2604 = vmatprep.subr.mxu0 0.0
  %2605 = vmatpush1.msra.mxu0 0.0
  %2606 = vmatprep.subr.mxu0 0.0
  %2607 = vmatpush1.msra.mxu0 0.0
  %2608 = vmatprep.subr.mxu0 0.0
  %2609 = vmatpush1.msra.mxu0 0.0
  %2610 = vmatprep.subr.mxu0 0.0
  %2611 = vmatpush1.msra.mxu0 0.0
  %2612 = vmatprep.subr.mxu0 0.0
  %2613 = vmatpush1.msra.mxu0 0.0
  %2614 = vmatprep.subr.mxu0 0.0
  %2615 = vmatpush1.msra.mxu0 0.0
  %2616 = vmatprep.subr.mxu0 0.0
  %2617 = vmatpush1.msra.mxu0 0.0
  %2618 = vmatprep.subr.mxu0 0.0
  %2619 = vmatpush1.msra.mxu0 0.0
  %2620 = vmatprep.subr.mxu0 0.0
  %2621 = vmatpush1.msra.mxu0 0.0
  %2622 = vmatprep.subr.mxu0 0.0
  %2623 = vmatpush1.msra.mxu0 0.0
  %2624 = vmatprep.subr.mxu0 0.0
  %2625 = vmatpush1.msra.mxu0 0.0
  %2626 = vmatprep.subr.mxu0 0.0
  %2627 = vmatpush1.msra.mxu0 0.0
  %2628 = vmatprep.subr.mxu0 0.0
  %2629 = vmatpush1.msra.mxu0 0.0
  %2630 = vmatprep.subr.mxu0 0.0
  %2631 = vmatpush1.msra.mxu0 0.0
  %2632 = vmatprep.subr.mxu0 0.0
  %2633 = vmatpush1.msra.mxu0 0.0
  %2634 = vmatprep.mubr.f32.mxu0 0.0
  %v2635 = vand.u32 %v1749, 4294901760
  %2636 = vmatmul.mubr.f32.gmra.mrb[0].mxu0 %v2635
  %v2637 = vpop.f32.mrb[0].mxu0
  %v2638 = vadd.f32 %v2486, %v2637
  %v2639 = vpop.f32.mrb[0].mxu0
  %v2640 = vadd.f32 %v2488, %v2639
  %2641 = vdwg.mxu0
  %v2642 = vand.u32 %v1714, 4294901760
  %v2643 = vsub.f32 %v1714, %v2642
  %2644 = vmatprep.subr.mxu0 %v2643
  %v2645 = vand.u32 %v1713, 4294901760
  %v2646 = vsub.f32 %v1713, %v2645
  %2647 = vmatpush1.msra.mxu0 %v2646
  %v2648 = vand.u32 %v1718, 4294901760
  %v2649 = vsub.f32 %v1718, %v2648
  %2650 = vmatprep.subr.mxu0 %v2649
  %v2651 = vand.u32 %v1717, 4294901760
  %v2652 = vsub.f32 %v1717, %v2651
  %2653 = vmatpush1.msra.mxu0 %v2652
  %v2654 = vand.u32 %v1722, 4294901760
  %v2655 = vsub.f32 %v1722, %v2654
  %2656 = vmatprep.subr.mxu0 %v2655
  %v2657 = vand.u32 %v1721, 4294901760
  %v2658 = vsub.f32 %v1721, %v2657
  %2659 = vmatpush1.msra.mxu0 %v2658
  %v2660 = vand.u32 %v1726, 4294901760
  %v2661 = vsub.f32 %v1726, %v2660
  %2662 = vmatprep.subr.mxu0 %v2661
  %v2663 = vand.u32 %v1725, 4294901760
  %v2664 = vsub.f32 %v1725, %v2663
  %2665 = vmatpush1.msra.mxu0 %v2664
  %v2666 = vand.u32 %v1730, 4294901760
  %v2667 = vsub.f32 %v1730, %v2666
  %2668 = vmatprep.subr.mxu0 %v2667
  %v2669 = vand.u32 %v1729, 4294901760
  %v2670 = vsub.f32 %v1729, %v2669
  %2671 = vmatpush1.msra.mxu0 %v2670
  %v2672 = vand.u32 %v1734, 4294901760
  %v2673 = vsub.f32 %v1734, %v2672
  %2674 = vmatprep.subr.mxu0 %v2673
  %v2675 = vand.u32 %v1733, 4294901760
  %v2676 = vsub.f32 %v1733, %v2675
  %2677 = vmatpush1.msra.mxu0 %v2676
  %v2678 = vand.u32 %v1738, 4294901760
  %v2679 = vsub.f32 %v1738, %v2678
  %2680 = vmatprep.subr.mxu0 %v2679
  %v2681 = vand.u32 %v1737, 4294901760
  %v2682 = vsub.f32 %v1737, %v2681
  %2683 = vmatpush1.msra.mxu0 %v2682
  %v2684 = vand.u32 %v1742, 4294901760
  %v2685 = vsub.f32 %v1742, %v2684
  %2686 = vmatprep.subr.mxu0 %v2685
  %v2687 = vand.u32 %v1741, 4294901760
  %v2688 = vsub.f32 %v1741, %v2687
  %2689 = vmatpush1.msra.mxu0 %v2688
  %2690 = vmatprep.subr.mxu0 0.0
  %2691 = vmatpush1.msra.mxu0 0.0
  %2692 = vmatprep.subr.mxu0 0.0
  %2693 = vmatpush1.msra.mxu0 0.0
  %2694 = vmatprep.subr.mxu0 0.0
  %2695 = vmatpush1.msra.mxu0 0.0
  %2696 = vmatprep.subr.mxu0 0.0
  %2697 = vmatpush1.msra.mxu0 0.0
  %2698 = vmatprep.subr.mxu0 0.0
  %2699 = vmatpush1.msra.mxu0 0.0
  %2700 = vmatprep.subr.mxu0 0.0
  %2701 = vmatpush1.msra.mxu0 0.0
  %2702 = vmatprep.subr.mxu0 0.0
  %2703 = vmatpush1.msra.mxu0 0.0
  %2704 = vmatprep.subr.mxu0 0.0
  %2705 = vmatpush1.msra.mxu0 0.0
  %2706 = vmatprep.subr.mxu0 0.0
  %2707 = vmatpush1.msra.mxu0 0.0
  %2708 = vmatprep.subr.mxu0 0.0
  %2709 = vmatpush1.msra.mxu0 0.0
  %2710 = vmatprep.subr.mxu0 0.0
  %2711 = vmatpush1.msra.mxu0 0.0
  %2712 = vmatprep.subr.mxu0 0.0
  %2713 = vmatpush1.msra.mxu0 0.0
  %2714 = vmatprep.subr.mxu0 0.0
  %2715 = vmatpush1.msra.mxu0 0.0
  %2716 = vmatprep.subr.mxu0 0.0
  %2717 = vmatpush1.msra.mxu0 0.0
  %2718 = vmatprep.subr.mxu0 0.0
  %2719 = vmatpush1.msra.mxu0 0.0
  %2720 = vmatprep.subr.mxu0 0.0
  %2721 = vmatpush1.msra.mxu0 0.0
  %2722 = vmatprep.subr.mxu0 0.0
  %2723 = vmatpush1.msra.mxu0 0.0
  %2724 = vmatprep.subr.mxu0 0.0
  %2725 = vmatpush1.msra.mxu0 0.0
  %2726 = vmatprep.subr.mxu0 0.0
  %2727 = vmatpush1.msra.mxu0 0.0
  %2728 = vmatprep.subr.mxu0 0.0
  %2729 = vmatpush1.msra.mxu0 0.0
  %2730 = vmatprep.subr.mxu0 0.0
  %2731 = vmatpush1.msra.mxu0 0.0
  %2732 = vmatprep.subr.mxu0 0.0
  %2733 = vmatpush1.msra.mxu0 0.0
  %2734 = vmatprep.subr.mxu0 0.0
  %2735 = vmatpush1.msra.mxu0 0.0
  %2736 = vmatprep.subr.mxu0 0.0
  %2737 = vmatpush1.msra.mxu0 0.0
  %2738 = vmatprep.mubr.f32.mxu0 0.0
  %v2739 = vand.u32 %v1749, 4294901760
  %v2740 = vsub.f32 %v1749, %v2739
  %2741 = vmatmul.mubr.f32.gmra.mrb[0].mxu0 %v2740
  %v2742 = vpop.f32.mrb[0].mxu0
  %v2743 = vadd.f32 %v2638, %v2742
  %v2744 = vpop.f32.mrb[0].mxu0
  %v2745 = vadd.f32 %v2640, %v2744
  %2746 = vdwg.mxu0
  %v2747 = vand.u32 %v1714, 4294901760
  %2748 = vmatprep.subr.mxu0 %v2747
  %v2749 = vand.u32 %v1713, 4294901760
  %2750 = vmatpush1.msra.mxu0 %v2749
  %v2751 = vand.u32 %v1718, 4294901760
  %2752 = vmatprep.subr.mxu0 %v2751
  %v2753 = vand.u32 %v1717, 4294901760
  %2754 = vmatpush1.msra.mxu0 %v2753
  %v2755 = vand.u32 %v1722, 4294901760
  %2756 = vmatprep.subr.mxu0 %v2755
  %v2757 = vand.u32 %v1721, 4294901760
  %2758 = vmatpush1.msra.mxu0 %v2757
  %v2759 = vand.u32 %v1726, 4294901760
  %2760 = vmatprep.subr.mxu0 %v2759
  %v2761 = vand.u32 %v1725, 4294901760
  %2762 = vmatpush1.msra.mxu0 %v2761
  %v2763 = vand.u32 %v1730, 4294901760
  %2764 = vmatprep.subr.mxu0 %v2763
  %v2765 = vand.u32 %v1729, 4294901760
  %2766 = vmatpush1.msra.mxu0 %v2765
  %v2767 = vand.u32 %v1734, 4294901760
  %2768 = vmatprep.subr.mxu0 %v2767
  %v2769 = vand.u32 %v1733, 4294901760
  %2770 = vmatpush1.msra.mxu0 %v2769
  %v2771 = vand.u32 %v1738, 4294901760
  %2772 = vmatprep.subr.mxu0 %v2771
  %v2773 = vand.u32 %v1737, 4294901760
  %2774 = vmatpush1.msra.mxu0 %v2773
  %v2775 = vand.u32 %v1742, 4294901760
  %2776 = vmatprep.subr.mxu0 %v2775
  %v2777 = vand.u32 %v1741, 4294901760
  %2778 = vmatpush1.msra.mxu0 %v2777
  %2779 = vmatprep.subr.mxu0 0.0
  %2780 = vmatpush1.msra.mxu0 0.0
  %2781 = vmatprep.subr.mxu0 0.0
  %2782 = vmatpush1.msra.mxu0 0.0
  %2783 = vmatprep.subr.mxu0 0.0
  %2784 = vmatpush1.msra.mxu0 0.0
  %2785 = vmatprep.subr.mxu0 0.0
  %2786 = vmatpush1.msra.mxu0 0.0
  %2787 = vmatprep.subr.mxu0 0.0
  %2788 = vmatpush1.msra.mxu0 0.0
  %2789 = vmatprep.subr.mxu0 0.0
  %2790 = vmatpush1.msra.mxu0 0.0
  %2791 = vmatprep.subr.mxu0 0.0
  %2792 = vmatpush1.msra.mxu0 0.0
  %2793 = vmatprep.subr.mxu0 0.0
  %2794 = vmatpush1.msra.mxu0 0.0
  %2795 = vmatprep.subr.mxu0 0.0
  %2796 = vmatpush1.msra.mxu0 0.0
  %2797 = vmatprep.subr.mxu0 0.0
  %2798 = vmatpush1.msra.mxu0 0.0
  %2799 = vmatprep.subr.mxu0 0.0
  %2800 = vmatpush1.msra.mxu0 0.0
  %2801 = vmatprep.subr.mxu0 0.0
  %2802 = vmatpush1.msra.mxu0 0.0
  %2803 = vmatprep.subr.mxu0 0.0
  %2804 = vmatpush1.msra.mxu0 0.0
  %2805 = vmatprep.subr.mxu0 0.0
  %2806 = vmatpush1.msra.mxu0 0.0
  %2807 = vmatprep.subr.mxu0 0.0
  %2808 = vmatpush1.msra.mxu0 0.0
  %2809 = vmatprep.subr.mxu0 0.0
  %2810 = vmatpush1.msra.mxu0 0.0
  %2811 = vmatprep.subr.mxu0 0.0
  %2812 = vmatpush1.msra.mxu0 0.0
  %2813 = vmatprep.subr.mxu0 0.0
  %2814 = vmatpush1.msra.mxu0 0.0
  %2815 = vmatprep.subr.mxu0 0.0
  %2816 = vmatpush1.msra.mxu0 0.0
  %2817 = vmatprep.subr.mxu0 0.0
  %2818 = vmatpush1.msra.mxu0 0.0
  %2819 = vmatprep.subr.mxu0 0.0
  %2820 = vmatpush1.msra.mxu0 0.0
  %2821 = vmatprep.subr.mxu0 0.0
  %2822 = vmatpush1.msra.mxu0 0.0
  %2823 = vmatprep.subr.mxu0 0.0
  %2824 = vmatpush1.msra.mxu0 0.0
  %2825 = vmatprep.subr.mxu0 0.0
  %2826 = vmatpush1.msra.mxu0 0.0
  %2827 = vmatprep.mubr.f32.mxu0 0.0
  %v2828 = vand.u32 %v1749, 4294901760
  %v2829 = vsub.f32 %v1749, %v2828
  %v2830 = vand.u32 %v2829, 4294901760
  %2831 = vmatmul.mubr.f32.gmra.mrb[0].mxu0 %v2830
  %v2832 = vpop.f32.mrb[0].mxu0
  %v2833 = vadd.f32 %v2743, %v2832
  %v2834 = vpop.f32.mrb[0].mxu0
  %v2835 = vadd.f32 %v2745, %v2834
  %2836 = vdwg.mxu0
  %v2837 = vand.u32 %v1714, 4294901760
  %v2838 = vsub.f32 %v1714, %v2837
  %v2839 = vand.u32 %v2838, 4294901760
  %2840 = vmatprep.subr.mxu0 %v2839
  %v2841 = vand.u32 %v1713, 4294901760
  %v2842 = vsub.f32 %v1713, %v2841
  %v2843 = vand.u32 %v2842, 4294901760
  %2844 = vmatpush1.msra.mxu0 %v2843
  %v2845 = vand.u32 %v1718, 4294901760
  %v2846 = vsub.f32 %v1718, %v2845
  %v2847 = vand.u32 %v2846, 4294901760
  %2848 = vmatprep.subr.mxu0 %v2847
  %v2849 = vand.u32 %v1717, 4294901760
  %v2850 = vsub.f32 %v1717, %v2849
  %v2851 = vand.u32 %v2850, 4294901760
  %2852 = vmatpush1.msra.mxu0 %v2851
  %v2853 = vand.u32 %v1722, 4294901760
  %v2854 = vsub.f32 %v1722, %v2853
  %v2855 = vand.u32 %v2854, 4294901760
  %2856 = vmatprep.subr.mxu0 %v2855
  %v2857 = vand.u32 %v1721, 4294901760
  %v2858 = vsub.f32 %v1721, %v2857
  %v2859 = vand.u32 %v2858, 4294901760
  %2860 = vmatpush1.msra.mxu0 %v2859
  %v2861 = vand.u32 %v1726, 4294901760
  %v2862 = vsub.f32 %v1726, %v2861
  %v2863 = vand.u32 %v2862, 4294901760
  %2864 = vmatprep.subr.mxu0 %v2863
  %v2865 = vand.u32 %v1725, 4294901760
  %v2866 = vsub.f32 %v1725, %v2865
  %v2867 = vand.u32 %v2866, 4294901760
  %2868 = vmatpush1.msra.mxu0 %v2867
  %v2869 = vand.u32 %v1730, 4294901760
  %v2870 = vsub.f32 %v1730, %v2869
  %v2871 = vand.u32 %v2870, 4294901760
  %2872 = vmatprep.subr.mxu0 %v2871
  %v2873 = vand.u32 %v1729, 4294901760
  %v2874 = vsub.f32 %v1729, %v2873
  %v2875 = vand.u32 %v2874, 4294901760
  %2876 = vmatpush1.msra.mxu0 %v2875
  %v2877 = vand.u32 %v1734, 4294901760
  %v2878 = vsub.f32 %v1734, %v2877
  %v2879 = vand.u32 %v2878, 4294901760
  %2880 = vmatprep.subr.mxu0 %v2879
  %v2881 = vand.u32 %v1733, 4294901760
  %v2882 = vsub.f32 %v1733, %v2881
  %v2883 = vand.u32 %v2882, 4294901760
  %2884 = vmatpush1.msra.mxu0 %v2883
  %v2885 = vand.u32 %v1738, 4294901760
  %v2886 = vsub.f32 %v1738, %v2885
  %v2887 = vand.u32 %v2886, 4294901760
  %2888 = vmatprep.subr.mxu0 %v2887
  %v2889 = vand.u32 %v1737, 4294901760
  %v2890 = vsub.f32 %v1737, %v2889
  %v2891 = vand.u32 %v2890, 4294901760
  %2892 = vmatpush1.msra.mxu0 %v2891
  %v2893 = vand.u32 %v1742, 4294901760
  %v2894 = vsub.f32 %v1742, %v2893
  %v2895 = vand.u32 %v2894, 4294901760
  %2896 = vmatprep.subr.mxu0 %v2895
  %v2897 = vand.u32 %v1741, 4294901760
  %v2898 = vsub.f32 %v1741, %v2897
  %v2899 = vand.u32 %v2898, 4294901760
  %2900 = vmatpush1.msra.mxu0 %v2899
  %2901 = vmatprep.subr.mxu0 0.0
  %2902 = vmatpush1.msra.mxu0 0.0
  %2903 = vmatprep.subr.mxu0 0.0
  %2904 = vmatpush1.msra.mxu0 0.0
  %2905 = vmatprep.subr.mxu0 0.0
  %2906 = vmatpush1.msra.mxu0 0.0
  %2907 = vmatprep.subr.mxu0 0.0
  %2908 = vmatpush1.msra.mxu0 0.0
  %2909 = vmatprep.subr.mxu0 0.0
  %2910 = vmatpush1.msra.mxu0 0.0
  %2911 = vmatprep.subr.mxu0 0.0
  %2912 = vmatpush1.msra.mxu0 0.0
  %2913 = vmatprep.subr.mxu0 0.0
  %2914 = vmatpush1.msra.mxu0 0.0
  %2915 = vmatprep.subr.mxu0 0.0
  %2916 = vmatpush1.msra.mxu0 0.0
  %2917 = vmatprep.subr.mxu0 0.0
  %2918 = vmatpush1.msra.mxu0 0.0
  %2919 = vmatprep.subr.mxu0 0.0
  %2920 = vmatpush1.msra.mxu0 0.0
  %2921 = vmatprep.subr.mxu0 0.0
  %2922 = vmatpush1.msra.mxu0 0.0
  %2923 = vmatprep.subr.mxu0 0.0
  %2924 = vmatpush1.msra.mxu0 0.0
  %2925 = vmatprep.subr.mxu0 0.0
  %2926 = vmatpush1.msra.mxu0 0.0
  %2927 = vmatprep.subr.mxu0 0.0
  %2928 = vmatpush1.msra.mxu0 0.0
  %2929 = vmatprep.subr.mxu0 0.0
  %2930 = vmatpush1.msra.mxu0 0.0
  %2931 = vmatprep.subr.mxu0 0.0
  %2932 = vmatpush1.msra.mxu0 0.0
  %2933 = vmatprep.subr.mxu0 0.0
  %2934 = vmatpush1.msra.mxu0 0.0
  %2935 = vmatprep.subr.mxu0 0.0
  %2936 = vmatpush1.msra.mxu0 0.0
  %2937 = vmatprep.subr.mxu0 0.0
  %2938 = vmatpush1.msra.mxu0 0.0
  %2939 = vmatprep.subr.mxu0 0.0
  %2940 = vmatpush1.msra.mxu0 0.0
  %2941 = vmatprep.subr.mxu0 0.0
  %2942 = vmatpush1.msra.mxu0 0.0
  %2943 = vmatprep.subr.mxu0 0.0
  %2944 = vmatpush1.msra.mxu0 0.0
  %2945 = vmatprep.subr.mxu0 0.0
  %2946 = vmatpush1.msra.mxu0 0.0
  %2947 = vmatprep.subr.mxu0 0.0
  %2948 = vmatpush1.msra.mxu0 0.0
  %2949 = vmatprep.mubr.f32.mxu0 0.0
  %v2950 = vand.u32 %v1749, 4294901760
  %2951 = vmatmul.mubr.f32.gmra.mrb[0].mxu0 %v2950
  %v2952 = vpop.f32.mrb[0].mxu0
  %v2953 = vadd.f32 %v2833, %v2952
  %v2954 = vpop.f32.mrb[0].mxu0
  %v2955 = vadd.f32 %v2835, %v2954
  %2956 = vdwg.mxu0
  %v2957 = vand.u32 %v1714, 4294901760
  %2958 = vmatprep.subr.mxu0 %v2957
  %v2959 = vand.u32 %v1713, 4294901760
  %2960 = vmatpush1.msra.mxu0 %v2959
  %v2961 = vand.u32 %v1718, 4294901760
  %2962 = vmatprep.subr.mxu0 %v2961
  %v2963 = vand.u32 %v1717, 4294901760
  %2964 = vmatpush1.msra.mxu0 %v2963
  %v2965 = vand.u32 %v1722, 4294901760
  %2966 = vmatprep.subr.mxu0 %v2965
  %v2967 = vand.u32 %v1721, 4294901760
  %2968 = vmatpush1.msra.mxu0 %v2967
  %v2969 = vand.u32 %v1726, 4294901760
  %2970 = vmatprep.subr.mxu0 %v2969
  %v2971 = vand.u32 %v1725, 4294901760
  %2972 = vmatpush1.msra.mxu0 %v2971
  %v2973 = vand.u32 %v1730, 4294901760
  %2974 = vmatprep.subr.mxu0 %v2973
  %v2975 = vand.u32 %v1729, 4294901760
  %2976 = vmatpush1.msra.mxu0 %v2975
  %v2977 = vand.u32 %v1734, 4294901760
  %2978 = vmatprep.subr.mxu0 %v2977
  %v2979 = vand.u32 %v1733, 4294901760
  %2980 = vmatpush1.msra.mxu0 %v2979
  %v2981 = vand.u32 %v1738, 4294901760
  %2982 = vmatprep.subr.mxu0 %v2981
  %v2983 = vand.u32 %v1737, 4294901760
  %2984 = vmatpush1.msra.mxu0 %v2983
  %v2985 = vand.u32 %v1742, 4294901760
  %2986 = vmatprep.subr.mxu0 %v2985
  %v2987 = vand.u32 %v1741, 4294901760
  %2988 = vmatpush1.msra.mxu0 %v2987
  %2989 = vmatprep.subr.mxu0 0.0
  %2990 = vmatpush1.msra.mxu0 0.0
  %2991 = vmatprep.subr.mxu0 0.0
  %2992 = vmatpush1.msra.mxu0 0.0
  %2993 = vmatprep.subr.mxu0 0.0
  %2994 = vmatpush1.msra.mxu0 0.0
  %2995 = vmatprep.subr.mxu0 0.0
  %2996 = vmatpush1.msra.mxu0 0.0
  %2997 = vmatprep.subr.mxu0 0.0
  %2998 = vmatpush1.msra.mxu0 0.0
  %2999 = vmatprep.subr.mxu0 0.0
  %3000 = vmatpush1.msra.mxu0 0.0
  %3001 = vmatprep.subr.mxu0 0.0
  %3002 = vmatpush1.msra.mxu0 0.0
  %3003 = vmatprep.subr.mxu0 0.0
  %3004 = vmatpush1.msra.mxu0 0.0
  %3005 = vmatprep.subr.mxu0 0.0
  %3006 = vmatpush1.msra.mxu0 0.0
  %3007 = vmatprep.subr.mxu0 0.0
  %3008 = vmatpush1.msra.mxu0 0.0
  %3009 = vmatprep.subr.mxu0 0.0
  %3010 = vmatpush1.msra.mxu0 0.0
  %3011 = vmatprep.subr.mxu0 0.0
  %3012 = vmatpush1.msra.mxu0 0.0
  %3013 = vmatprep.subr.mxu0 0.0
  %3014 = vmatpush1.msra.mxu0 0.0
  %3015 = vmatprep.subr.mxu0 0.0
  %3016 = vmatpush1.msra.mxu0 0.0
  %3017 = vmatprep.subr.mxu0 0.0
  %3018 = vmatpush1.msra.mxu0 0.0
  %3019 = vmatprep.subr.mxu0 0.0
  %3020 = vmatpush1.msra.mxu0 0.0
  %3021 = vmatprep.subr.mxu0 0.0
  %3022 = vmatpush1.msra.mxu0 0.0
  %3023 = vmatprep.subr.mxu0 0.0
  %3024 = vmatpush1.msra.mxu0 0.0
  %3025 = vmatprep.subr.mxu0 0.0
  %3026 = vmatpush1.msra.mxu0 0.0
  %3027 = vmatprep.subr.mxu0 0.0
  %3028 = vmatpush1.msra.mxu0 0.0
  %3029 = vmatprep.subr.mxu0 0.0
  %3030 = vmatpush1.msra.mxu0 0.0
  %3031 = vmatprep.subr.mxu0 0.0
  %3032 = vmatpush1.msra.mxu0 0.0
  %3033 = vmatprep.subr.mxu0 0.0
  %3034 = vmatpush1.msra.mxu0 0.0
  %3035 = vmatprep.subr.mxu0 0.0
  %3036 = vmatpush1.msra.mxu0 0.0
  %3037 = vmatprep.mubr.f32.mxu0 0.0
  %v3038 = vand.u32 %v1749, 4294901760
  %3039 = vmatmul.mubr.f32.gmra.mrb[0].mxu0 %v3038
  %v3040 = vpop.f32.mrb[0].mxu0
  %v3041 = vadd.f32 %v2953, %v3040
  %v3042 = vpop.f32.mrb[0].mxu0
  %v3043 = vadd.f32 %v2955, %v3042
  %3044 = vdwg.mxu0
  %v3049 = vrot.slane %v2394, 7
  %v3050 = vrot.slane %v2396, 7
  %v3051 = vrot.slane %v3041, 7
  %v3052 = vrot.slane %v3043, 7
  %v3057 = vsub.f32 %v2394, %v3049
  %v3058 = vsub.f32 %v2396, %v3050
  %v3059 = vsub.f32 %v3041, %v3051
  %v3060 = vsub.f32 %v3043, %v3052
  %v3061 = vmul.f32 %v3057, 1.442695
  %v3062 = vpow.pop %v3061
  %v3063 = vmul.f32 %v3058, 1.442695
  %v3064 = vpow.pop %v3063
  %v3065 = vmul.f32 %v3059, 1.442695
  %v3066 = vpow.pop %v3065
  %v3067 = vmul.f32 %v3060, 1.442695
  %v3068 = vpow.pop %v3067
  %v3069 = vadd.f32 %v3062, 1.0
  %v3070 = vadd.f32 %v3064, 1.0
  %v3071 = vadd.f32 %v3066, 1.0
  %v3072 = vadd.f32 %v3068, 1.0
  %v3073 = vrcp.pop %v3069
  %v3074 = vrcp.pop %v3070
  %v3075 = vrcp.pop %v3071
  %v3076 = vrcp.pop %v3072
  %v3077 = vmul.f32 %v3069, %v3073
  %v3078 = vmul.f32 %v3070, %v3074
  %v3079 = vmul.f32 %v3071, %v3075
  %v3080 = vmul.f32 %v3072, %v3076
  %v3081 = vsub.f32 2.0, %v3077
  %v3082 = vsub.f32 2.0, %v3078
  %v3083 = vsub.f32 2.0, %v3079
  %v3084 = vsub.f32 2.0, %v3080
  %v3085 = vmul.f32 %v3073, %v3081
  %v3086 = vmul.f32 %v3074, %v3082
  %v3087 = vmul.f32 %v3075, %v3083
  %v3088 = vmul.f32 %v3076, %v3084
  %v3093 = vcombine.low %v3085, %v3086
  %v3094 = vcombine.low %v3087, %v3088
  %v3096 = vunpack.c.l.s4 1966171168
  %v3097 = vunpack.c.0.s8 %v3096
  %v3098 = vlaneseq
  %v3099 = vshrl.u32 %v3098, 7
  %v3100 = vsub.s32 %v3097, %v3099
  %v3101 = vrot.slane %v3093, %v3100
  %v3103 = vunpack.c.l.s4 1966171168
  %v3104 = vunpack.c.0.s8 %v3103
  %v3105 = vlaneseq
  %v3106 = vshrl.u32 %v3105, 7
  %v3107 = vsub.s32 %v3104, %v3106
  %v3108 = vrot.slane %v3094, %v3107
  %v3109 = vcombine.high %v3101, %v3108
  %v3111 = vunpack.c.l.s4 1966171168
  %v3112 = vunpack.c.0.s8 %v3111
  %v3113 = vlaneseq
  %v3114 = vshrl.u32 %v3113, 7
  %v3115 = vsub.s32 %v3112, %v3114
  %v3116 = vrot.slane %v3109, %v3115
  %v3118 = vlaneseq
  %vm3119 = vcmp.ge.s32.totalorder %v3118, 0
  %vm3120 = vcmp.lt.s32.totalorder %v3118, 512
  %vm3121 = vmand %vm3119, %vm3120
  %3122 = vst.msk [vmem:[%s3] ss:$2 sm:$0xf] %vm3121, %v3116
  %v3123 = vsub.f32 1.0, %v3085
  %v3124 = vsub.f32 1.0, %v3086
  %v3125 = vsub.f32 1.0, %v3087
  %v3126 = vsub.f32 1.0, %v3088
  %v3131 = vcombine.low %v3123, %v3124
  %v3132 = vcombine.low %v3125, %v3126
  %v3134 = vunpack.c.l.s4 1966171168
  %v3135 = vunpack.c.0.s8 %v3134
  %v3136 = vlaneseq
  %v3137 = vshrl.u32 %v3136, 7
  %v3138 = vsub.s32 %v3135, %v3137
  %v3139 = vrot.slane %v3131, %v3138
  %v3141 = vunpack.c.l.s4 1966171168
  %v3142 = vunpack.c.0.s8 %v3141
  %v3143 = vlaneseq
  %v3144 = vshrl.u32 %v3143, 7
  %v3145 = vsub.s32 %v3142, %v3144
  %v3146 = vrot.slane %v3132, %v3145
  %v3147 = vcombine.high %v3139, %v3146
  %v3149 = vunpack.c.l.s4 1966171168
  %v3150 = vunpack.c.0.s8 %v3149
  %v3151 = vlaneseq
  %v3152 = vshrl.u32 %v3151, 7
  %v3153 = vsub.s32 %v3150, %v3152
  %v3154 = vrot.slane %v3147, %v3153
  %s3156 = scalar_lea.vmem %s3, 1
  %3157 = vst.msk [vmem:[%s3156] ss:$2 sm:$0xf] %vm3121, %v3154
  // Predicated region
  $region14: #{policy_forward.1} parent=0 // pred_check
    _
  $region15: #{policy_forward.1} parent=0 // pred_check_branch
    %3159 = sbr.rel (0) target = $region17
  $region16: #{policy_forward.1} parent=0 // pred_region
    _
  $region17: #{policy_forward.1} parent=0 // pred_fallthru
    _
  // Predicated region
  $region18: #{policy_forward.1} parent=0 // pred_check
    _
  $region19: #{policy_forward.1} parent=0 // pred_check_branch
    %3161 = sbr.rel (0) target = $region21
  $region20: #{policy_forward.1} parent=0 // pred_region
    _
  $region21: #{policy_forward.1} parent=0 // pred_fallthru
    _

</llo_original>
